<compile_context>
chip_gen: v5e
topology: v5e:2x2
jax: 0.10.0
libtpu: 0.0.40
codegen_flags: <defaults>
</compile_context>

<pallas_src>
import jax
import jax.numpy as jnp
from jax.experimental import pallas as pl
from jax.experimental.pallas import tpu as pltpu

TM = 128          # node rows per grid step (multiple of 8; 128-aligned for MXU)
LANE = 128        # lane width to pad feature dims to


def gcn_layer1_kernel(a_ref, dinv_ref, xs_ref, w1_ref, b1_ref, hs_ref):
    # a_ref   : [TM, N_pad]  bf16  rows of (A + I), unnormalized
    # dinv_ref: [TM, 1]      f32   D^{-1/2} for this row tile
    # xs_ref  : [N_pad, Fp]  bf16  X pre-scaled by D^{-1/2} (rows)
    # w1_ref  : [Fp, H]      bf16
    # b1_ref  : [1, H]       f32
    # hs_ref  : [TM, H]      bf16  output: D^{-1/2} * relu(conv1 rows)
    ax = jnp.dot(a_ref[...], xs_ref[...], preferred_element_type=jnp.float32)
    axw = jnp.dot(ax.astype(jnp.bfloat16), w1_ref[...],
                  preferred_element_type=jnp.float32)
    d = dinv_ref[...]
    h = jnp.maximum(axw * d + b1_ref[...], 0.0)        # = relu(A_hat @ X @ W1 + b1)
    hs_ref[...] = (h * d).astype(jnp.bfloat16)          # pre-scale for layer 2


def gcn_layer2_kernel(a_ref, dinv_ref, hs_ref, w2_ref, b2_ref, out_ref):
    # a_ref   : [TM, N_pad]  bf16
    # dinv_ref: [TM, 1]      f32
    # hs_ref  : [N_pad, H]   bf16  D^{-1/2} * H
    # w2_ref  : [H, Cp]      bf16  (padded class columns are zero)
    # b2_ref  : [1, Cp]      f32   (padded class entries are -1e9)
    # out_ref : [TM, Cp]     f32   log_softmax rows (padded cols sliced outside)
    ah = jnp.dot(a_ref[...], hs_ref[...], preferred_element_type=jnp.float32)
    z = jnp.dot(ah.astype(jnp.bfloat16), w2_ref[...],
                preferred_element_type=jnp.float32) * dinv_ref[...] + b2_ref[...]
    z_max = jnp.max(z, axis=1, keepdims=True)
    z_shift = z - z_max
    lse = jnp.log(jnp.sum(jnp.exp(z_shift), axis=1, keepdims=True))
    out_ref[...] = z_shift - lse


def _pad_up(v, m):
    return ((v + m - 1) // m) * m


def gnn_forward(x, edge_index, w1, b1, w2, b2):
    n, f_in = x.shape
    hdim = w1.shape[1]
    c = w2.shape[1]

    n_pad = _pad_up(n, TM)
    f_pad = _pad_up(f_in, LANE)
    h_pad = _pad_up(hdim, LANE)
    c_pad = _pad_up(c, LANE)

    # ---- plain-JAX glue: dense A + I, degrees, D^{-1/2} (no normalized N^2 array) ----
    src, dst = edge_index[0], edge_index[1]
    a = jnp.zeros((n, n), jnp.float32).at[dst, src].set(1.0)
    a = a + jnp.eye(n, dtype=jnp.float32)                     # add self loops
    deg = jnp.sum(a, axis=1)
    dinv = jax.lax.rsqrt(jnp.maximum(deg, 1e-12))

    a_pad = jnp.zeros((n_pad, n_pad), jnp.bfloat16).at[:n, :n].set(
        a.astype(jnp.bfloat16))
    dinv_pad = jnp.zeros((n_pad, 1), jnp.float32).at[:n, 0].set(dinv)

    # A_hat @ M == dinv_rows * ((A+I) @ (dinv_rows * M)): pre-scale X rows once.
    xs = x * dinv[:, None]
    xs_pad = jnp.zeros((n_pad, f_pad), jnp.bfloat16).at[:n, :f_in].set(
        xs.astype(jnp.bfloat16))

    w1_pad = jnp.zeros((f_pad, h_pad), jnp.bfloat16).at[:f_in, :hdim].set(
        w1.astype(jnp.bfloat16))
    b1_pad = jnp.zeros((1, h_pad), jnp.float32).at[0, :hdim].set(
        b1.astype(jnp.float32))
    w2_pad = jnp.zeros((h_pad, c_pad), jnp.bfloat16).at[:hdim, :c].set(
        w2.astype(jnp.bfloat16))
    # Padded class logits are pushed to -1e9 so in-kernel log_softmax ignores them.
    b2_pad = jnp.full((1, c_pad), -1e9, jnp.float32).at[0, :c].set(
        b2.astype(jnp.float32))

    grid = (n_pad // TM,)
    parallel = pltpu.CompilerParams(dimension_semantics=("parallel",))

    # ---- layer 1: Hs = D^{-1/2} * relu(A_hat @ X @ W1 + b1) ----
    hs = pl.pallas_call(
        gcn_layer1_kernel,
        out_shape=jax.ShapeDtypeStruct((n_pad, h_pad), jnp.bfloat16),
        grid=grid,
        in_specs=[
            pl.BlockSpec((TM, n_pad), lambda i: (i, 0)),
            pl.BlockSpec((TM, 1), lambda i: (i, 0)),
            pl.BlockSpec((n_pad, f_pad), lambda i: (0, 0)),
            pl.BlockSpec((f_pad, h_pad), lambda i: (0, 0)),
            pl.BlockSpec((1, h_pad), lambda i: (0, 0)),
        ],
        out_specs=pl.BlockSpec((TM, h_pad), lambda i: (i, 0)),
        compiler_params=parallel,
    )(a_pad, dinv_pad, xs_pad, w1_pad, b1_pad)

    # ---- layer 2 + log_softmax ----
    out_pad = pl.pallas_call(
        gcn_layer2_kernel,
        out_shape=jax.ShapeDtypeStruct((n_pad, c_pad), jnp.float32),
        grid=grid,
        in_specs=[
            pl.BlockSpec((TM, n_pad), lambda i: (i, 0)),
            pl.BlockSpec((TM, 1), lambda i: (i, 0)),
            pl.BlockSpec((n_pad, h_pad), lambda i: (0, 0)),
            pl.BlockSpec((h_pad, c_pad), lambda i: (0, 0)),
            pl.BlockSpec((1, c_pad), lambda i: (0, 0)),
        ],
        out_specs=pl.BlockSpec((TM, c_pad), lambda i: (i, 0)),
        compiler_params=parallel,
    )(a_pad, dinv_pad, hs, w2_pad, b2_pad)

    return out_pad[:n, :c]


def reference_forward(x, edge_index, w1, b1, w2, b2):
    """Pure f32 JAX reference with the same adjacency semantics."""
    n = x.shape[0]
    src, dst = edge_index[0], edge_index[1]
    a = jnp.zeros((n, n), jnp.float32).at[dst, src].set(1.0)
    a = a + jnp.eye(n, dtype=jnp.float32)
    deg = jnp.sum(a, axis=1)
    dinv = jax.lax.rsqrt(jnp.maximum(deg, 1e-12))
    a_hat = dinv[:, None] * a * dinv[None, :]
    h = jnp.maximum(a_hat @ (x @ w1) + b1, 0.0)
    z = a_hat @ (h @ w2) + b2
    return jax.nn.log_softmax(z, axis=1)


if __name__ == "__main__":
    # Small shapes consistent with the module: hidden_dim = 128 per the spec,
    # a modest number of input features and classes, N nodes > one row tile.
    N, INPUT_DIM, HIDDEN_DIM, OUTPUT_DIM = 200, 16, 128, 4

    key = jax.random.PRNGKey(0)
    k_x, k_w1, k_b1, k_w2, k_b2, k_e = jax.random.split(key, 6)

    x = jax.random.normal(k_x, (N, INPUT_DIM), jnp.float32)

    # Deterministic graph: directed ring both ways + a few random edges.
    ring_src = jnp.arange(N)
    ring_dst = (jnp.arange(N) + 1) % N
    rand_src = jax.random.randint(k_e, (16,), 0, N)
    rand_dst = (rand_src + 3) % N
    edge_index = jnp.stack([
        jnp.concatenate([ring_src, ring_dst, rand_src]),
        jnp.concatenate([ring_dst, ring_src, rand_dst]),
    ]).astype(jnp.int32)                       # [2, E]

    # Deterministic parameter init (glorot-ish scale).
    w1 = jax.random.normal(k_w1, (INPUT_DIM, HIDDEN_DIM), jnp.float32) * 0.1
    b1 = jax.random.normal(k_b1, (HIDDEN_DIM,), jnp.float32) * 0.01
    w2 = jax.random.normal(k_w2, (HIDDEN_DIM, OUTPUT_DIM), jnp.float32) * 0.1
    b2 = jax.random.normal(k_b2, (OUTPUT_DIM,), jnp.float32) * 0.01

    out = jax.jit(gnn_forward)(x, edge_index, w1, b1, w2, b2)
    out = jax.block_until_ready(out)

    ref = reference_forward(x, edge_index, w1, b1, w2, b2)
    assert out.shape == (N, OUTPUT_DIM)
    assert bool(jnp.all(jnp.isfinite(out)))
    # Kernel streams A / activations / weights in bf16 (f32 accumulation), so
    # compare against the pure f32 reference with a bf16-appropriate tolerance.
    max_err = float(jnp.max(jnp.abs(out - ref)))
    assert max_err < 1e-1, max_err

    print("KERNEL_OK")
</pallas_src>

<mosaic_0001>
module attributes {stable_mosaic.version = 11 : i64} {
  func.func @gcn_layer1_kernel(%arg0: i32, %arg1: memref<128x256xbf16, #tpu.memory_space<vmem>>, %arg2: memref<128x1xf32, #tpu.memory_space<vmem>>, %arg3: memref<256x128xbf16, #tpu.memory_space<vmem>>, %arg4: memref<128x128xbf16, #tpu.memory_space<vmem>>, %arg5: memref<1x128xf32, #tpu.memory_space<vmem>>, %arg6: memref<128x128xbf16, #tpu.memory_space<vmem>>) attributes {dimension_semantics = [#tpu.dimension_semantics<parallel>], iteration_bounds = array<i64: 2>, scalar_prefetch = 0 : i64, scratch_operands = 0 : i64, tpu.core_type = #tpu.core_type<tc>, window_params = [{transform_indices = @transform_0, window_bounds = array<i64: 128, 256>}, {transform_indices = @transform_1, window_bounds = array<i64: 128, 1>}, {pipeline_mode = #tpu.pipeline_mode<synchronous>, transform_indices = @transform_2, window_bounds = array<i64: 256, 128>}, {pipeline_mode = #tpu.pipeline_mode<synchronous>, transform_indices = @transform_3, window_bounds = array<i64: 128, 128>}, {pipeline_mode = #tpu.pipeline_mode<synchronous>, transform_indices = @transform_4, window_bounds = array<i64: 1, 128>}, {transform_indices = @transform_5, window_bounds = array<i64: 128, 128>}]} {
    %c0 = arith.constant 0 : index
    %c0_0 = arith.constant 0 : index
    %0 = vector.load %arg1[%c0, %c0_0] : memref<128x256xbf16, #tpu.memory_space<vmem>>, vector<128x256xbf16>
    %c0_1 = arith.constant 0 : index
    %c0_2 = arith.constant 0 : index
    %1 = vector.load %arg3[%c0_1, %c0_2] : memref<256x128xbf16, #tpu.memory_space<vmem>>, vector<256x128xbf16>
    %cst = arith.constant dense<0.000000e+00> : vector<128x128xf32>
    %2 = tpu.matmul %0, %1, %cst {dimension_numbers = #tpu.dot_dimension_numbers<[1], [0], [0], [1], [0, 0, 1, 1], [], []>} : vector<128x256xbf16>, vector<256x128xbf16>, vector<128x128xf32> -> vector<128x128xf32>
    %3 = arith.truncf %2 : vector<128x128xf32> to vector<128x128xbf16>
    %c0_3 = arith.constant 0 : index
    %c0_4 = arith.constant 0 : index
    %4 = vector.load %arg4[%c0_3, %c0_4] : memref<128x128xbf16, #tpu.memory_space<vmem>>, vector<128x128xbf16>
    %cst_5 = arith.constant dense<0.000000e+00> : vector<128x128xf32>
    %5 = tpu.matmul %3, %4, %cst_5 {dimension_numbers = #tpu.dot_dimension_numbers<[1], [0], [0], [1], [0, 0, 1, 1], [], []>} : vector<128x128xbf16>, vector<128x128xbf16>, vector<128x128xf32> -> vector<128x128xf32>
    %c0_6 = arith.constant 0 : index
    %c0_7 = arith.constant 0 : index
    %6 = vector.load %arg2[%c0_6, %c0_7] : memref<128x1xf32, #tpu.memory_space<vmem>>, vector<128x1xf32>
    %7 = vector.broadcast %6 : vector<128x1xf32> to vector<128x128xf32>
    %8 = arith.mulf %5, %7 : vector<128x128xf32>
    %c0_8 = arith.constant 0 : index
    %c0_9 = arith.constant 0 : index
    %9 = vector.load %arg5[%c0_8, %c0_9] : memref<1x128xf32, #tpu.memory_space<vmem>>, vector<1x128xf32>
    %10 = vector.broadcast %9 : vector<1x128xf32> to vector<128x128xf32>
    %11 = arith.addf %8, %10 : vector<128x128xf32>
    %cst_10 = arith.constant 0.000000e+00 : f32
    %12 = vector.broadcast %cst_10 : f32 to vector<128x128xf32>
    %13 = arith.maximumf %11, %12 : vector<128x128xf32>
    %14 = vector.broadcast %6 : vector<128x1xf32> to vector<128x128xf32>
    %15 = arith.mulf %13, %14 : vector<128x128xf32>
    %16 = arith.truncf %15 : vector<128x128xf32> to vector<128x128xbf16>
    %c0_11 = arith.constant 0 : index
    %c0_12 = arith.constant 0 : index
    %17 = vector.load %arg6[%c0_11, %c0_12] : memref<128x128xbf16, #tpu.memory_space<vmem>>, vector<128x128xbf16>
    tpu.vector_store %arg6[%c0_11, %c0_12], %16 {strides = array<i32>} : memref<128x128xbf16, #tpu.memory_space<vmem>>, vector<128x128xbf16>,
    return
  }
  func.func @transform_0(%arg0: i32) -> (i32, i32) {
    %c0_i32 = arith.constant 0 : i32
    %c0_i32_0 = arith.constant 0 : i32
    return %arg0, %c0_i32 : i32, i32
  }
  func.func @transform_1(%arg0: i32) -> (i32, i32) {
    %c0_i32 = arith.constant 0 : i32
    %c0_i32_0 = arith.constant 0 : i32
    return %arg0, %c0_i32 : i32, i32
  }
  func.func @transform_2(%arg0: i32) -> (i32, i32) {
    %c0_i32 = arith.constant 0 : i32
    %c0_i32_0 = arith.constant 0 : i32
    %c0_i32_1 = arith.constant 0 : i32
    return %c0_i32, %c0_i32_0 : i32, i32
  }
  func.func @transform_3(%arg0: i32) -> (i32, i32) {
    %c0_i32 = arith.constant 0 : i32
    %c0_i32_0 = arith.constant 0 : i32
    %c0_i32_1 = arith.constant 0 : i32
    return %c0_i32, %c0_i32_0 : i32, i32
  }
  func.func @transform_4(%arg0: i32) -> (i32, i32) {
    %c0_i32 = arith.constant 0 : i32
    %c0_i32_0 = arith.constant 0 : i32
    %c0_i32_1 = arith.constant 0 : i32
    return %c0_i32, %c0_i32_0 : i32, i32
  }
  func.func @transform_5(%arg0: i32) -> (i32, i32) {
    %c0_i32 = arith.constant 0 : i32
    %c0_i32_0 = arith.constant 0 : i32
    return %arg0, %c0_i32 : i32, i32
  }
}

module attributes {stable_mosaic.version = 11 : i64} {
  func.func @gcn_layer2_kernel(%arg0: i32, %arg1: memref<128x256xbf16, #tpu.memory_space<vmem>>, %arg2: memref<128x1xf32, #tpu.memory_space<vmem>>, %arg3: memref<256x128xbf16, #tpu.memory_space<vmem>>, %arg4: memref<128x128xbf16, #tpu.memory_space<vmem>>, %arg5: memref<1x128xf32, #tpu.memory_space<vmem>>, %arg6: memref<128x128xf32, #tpu.memory_space<vmem>>) attributes {dimension_semantics = [#tpu.dimension_semantics<parallel>], iteration_bounds = array<i64: 2>, scalar_prefetch = 0 : i64, scratch_operands = 0 : i64, tpu.core_type = #tpu.core_type<tc>, window_params = [{transform_indices = @transform_0, window_bounds = array<i64: 128, 256>}, {transform_indices = @transform_1, window_bounds = array<i64: 128, 1>}, {pipeline_mode = #tpu.pipeline_mode<synchronous>, transform_indices = @transform_2, window_bounds = array<i64: 256, 128>}, {pipeline_mode = #tpu.pipeline_mode<synchronous>, transform_indices = @transform_3, window_bounds = array<i64: 128, 128>}, {pipeline_mode = #tpu.pipeline_mode<synchronous>, transform_indices = @transform_4, window_bounds = array<i64: 1, 128>}, {transform_indices = @transform_5, window_bounds = array<i64: 128, 128>}]} {
    %c0 = arith.constant 0 : index
    %c0_0 = arith.constant 0 : index
    %0 = vector.load %arg1[%c0, %c0_0] : memref<128x256xbf16, #tpu.memory_space<vmem>>, vector<128x256xbf16>
    %c0_1 = arith.constant 0 : index
    %c0_2 = arith.constant 0 : index
    %1 = vector.load %arg3[%c0_1, %c0_2] : memref<256x128xbf16, #tpu.memory_space<vmem>>, vector<256x128xbf16>
    %cst = arith.constant dense<0.000000e+00> : vector<128x128xf32>
    %2 = tpu.matmul %0, %1, %cst {dimension_numbers = #tpu.dot_dimension_numbers<[1], [0], [0], [1], [0, 0, 1, 1], [], []>} : vector<128x256xbf16>, vector<256x128xbf16>, vector<128x128xf32> -> vector<128x128xf32>
    %3 = arith.truncf %2 : vector<128x128xf32> to vector<128x128xbf16>
    %c0_3 = arith.constant 0 : index
    %c0_4 = arith.constant 0 : index
    %4 = vector.load %arg4[%c0_3, %c0_4] : memref<128x128xbf16, #tpu.memory_space<vmem>>, vector<128x128xbf16>
    %cst_5 = arith.constant dense<0.000000e+00> : vector<128x128xf32>
    %5 = tpu.matmul %3, %4, %cst_5 {dimension_numbers = #tpu.dot_dimension_numbers<[1], [0], [0], [1], [0, 0, 1, 1], [], []>} : vector<128x128xbf16>, vector<128x128xbf16>, vector<128x128xf32> -> vector<128x128xf32>
    %c0_6 = arith.constant 0 : index
    %c0_7 = arith.constant 0 : index
    %6 = vector.load %arg2[%c0_6, %c0_7] : memref<128x1xf32, #tpu.memory_space<vmem>>, vector<128x1xf32>
    %7 = vector.broadcast %6 : vector<128x1xf32> to vector<128x128xf32>
    %8 = arith.mulf %5, %7 : vector<128x128xf32>
    %c0_8 = arith.constant 0 : index
    %c0_9 = arith.constant 0 : index
    %9 = vector.load %arg5[%c0_8, %c0_9] : memref<1x128xf32, #tpu.memory_space<vmem>>, vector<1x128xf32>
    %10 = vector.broadcast %9 : vector<1x128xf32> to vector<128x128xf32>
    %11 = arith.addf %8, %10 : vector<128x128xf32>
    %cst_10 = arith.constant dense<0xFF800000> : vector<128xf32>
    %12 = vector.multi_reduction <maximumf>, %11, %cst_10 [1] : vector<128x128xf32> to vector<128xf32>
    %13 = vector.shape_cast %12 : vector<128xf32> to vector<128x1xf32>
    %14 = vector.broadcast %13 : vector<128x1xf32> to vector<128x128xf32>
    %15 = arith.subf %11, %14 : vector<128x128xf32>
    %16 = math.exp %15 : vector<128x128xf32>
    %cst_11 = arith.constant dense<0.000000e+00> : vector<128xf32>
    %17 = vector.multi_reduction <add>, %16, %cst_11 [1] : vector<128x128xf32> to vector<128xf32>
    %18 = vector.shape_cast %17 : vector<128xf32> to vector<128x1xf32>
    %19 = math.log %18 : vector<128x1xf32>
    %20 = vector.broadcast %19 : vector<128x1xf32> to vector<128x128xf32>
    %21 = arith.subf %15, %20 : vector<128x128xf32>
    %c0_12 = arith.constant 0 : index
    %c0_13 = arith.constant 0 : index
    %22 = vector.load %arg6[%c0_12, %c0_13] : memref<128x128xf32, #tpu.memory_space<vmem>>, vector<128x128xf32>
    tpu.vector_store %arg6[%c0_12, %c0_13], %21 {strides = array<i32>} : memref<128x128xf32, #tpu.memory_space<vmem>>, vector<128x128xf32>,
    return
  }
  func.func @transform_0(%arg0: i32) -> (i32, i32) {
    %c0_i32 = arith.constant 0 : i32
    %c0_i32_0 = arith.constant 0 : i32
    return %arg0, %c0_i32 : i32, i32
  }
  func.func @transform_1(%arg0: i32) -> (i32, i32) {
    %c0_i32 = arith.constant 0 : i32
    %c0_i32_0 = arith.constant 0 : i32
    return %arg0, %c0_i32 : i32, i32
  }
  func.func @transform_2(%arg0: i32) -> (i32, i32) {
    %c0_i32 = arith.constant 0 : i32
    %c0_i32_0 = arith.constant 0 : i32
    %c0_i32_1 = arith.constant 0 : i32
    return %c0_i32, %c0_i32_0 : i32, i32
  }
  func.func @transform_3(%arg0: i32) -> (i32, i32) {
    %c0_i32 = arith.constant 0 : i32
    %c0_i32_0 = arith.constant 0 : i32
    %c0_i32_1 = arith.constant 0 : i32
    return %c0_i32, %c0_i32_0 : i32, i32
  }
  func.func @transform_4(%arg0: i32) -> (i32, i32) {
    %c0_i32 = arith.constant 0 : i32
    %c0_i32_0 = arith.constant 0 : i32
    %c0_i32_1 = arith.constant 0 : i32
    return %c0_i32, %c0_i32_0 : i32, i32
  }
  func.func @transform_5(%arg0: i32) -> (i32, i32) {
    %c0_i32 = arith.constant 0 : i32
    %c0_i32_0 = arith.constant 0 : i32
    return %arg0, %c0_i32 : i32, i32
  }
}

</mosaic_0001>

<llo_original>
// kernel: gnn_forward.2
$region0: #{gnn_forward.2}
  #allocation0 [shape = 'u32[]', space=smem, size = 0x4, offset = 0x4, fixed_abs, tag = 'smem constant byte address 0x4 - core index']
  #allocation1 [shape = 'u32[72,128]{1,0:T(1,128)}', space=vmem, size = 0x9000, scoped, tag = 'internal scratch']
  %s0 = inlined_call_operand.vmem [shape: bf16[256,256], index: 0, kind: input, shape index: {}]
  %s1 = inlined_call_operand.vmem [shape: f32[256,1], index: 1, kind: input, shape index: {}]
  %s2 = inlined_call_operand.vmem [shape: bf16[256,128], index: 2, kind: input, shape index: {}]
  %s3 = inlined_call_operand.vmem [shape: bf16[128,128], index: 3, kind: input, shape index: {}]
  %s4 = inlined_call_operand.vmem [shape: f32[1,128], index: 4, kind: input, shape index: {}]
  %s5 = inlined_call_operand.vmem [shape: bf16[256,128], index: 5, kind: output, shape index: {}]
  %s6 = sld [smem:[#allocation0]]
  $region53: #{gnn_forward.2} parent=0
    _
  %s8 = ssub.s32 1, %s6
  %s9 = scalar_select 0, %s8, %s6
  loop: start=0, step=1, limit=4
  $region2: #{gnn_forward.2} parent=0 // loop_pre_header
    _
  $region3: #{gnn_forward.2} parent=0 // loop_header
    %s11 = sphi 0, %s15
    %p12 = scmp.ge.s32.totalorder %s11, 4
    %s21 = sphi 0, %s23
    %s24 = sphi 0, %s21
    %s25 = sphi 0, %s24
    %s41 = sphi 0, %s25
    %s47 = sphi 0, %s49
    %s50 = sphi 0, %s47
    %s51 = sphi 0, %s50
    %s67 = sphi 0, %s51
    %s71 = sphi 0, %s71
    %s73 = sphi 0, %s71
    %s74 = sphi 0, %s73
    %s88 = sphi 0, %s74
    %s92 = sphi 0, %s92
    %s94 = sphi 0, %s92
    %s95 = sphi 0, %s94
    %s109 = sphi 0, %s95
    %s113 = sphi 0, %s113
    %s115 = sphi 0, %s113
    %s116 = sphi 0, %s115
    %s130 = sphi 0, %s116
    %s136 = sphi 0, %s138
    %s139 = sphi 0, %s136
    %s140 = sphi 0, %s139
    %s156 = sphi 0, %s140
  $region4: #{gnn_forward.2} parent=0 // loop_header_branch
    %14 = sbr.rel (%p12) target = $region8
  $region5: #{gnn_forward.2} parent=0 // loop_body
    %s16 = ssub.s32 %s11, 1
    %s17 = ssub.s32 %s11, 2
    %s18 = sadd.s32 %s11, 1
    %s19 = ssub.s32 %s11, %s18
    %p20 = scmp.eq.s32.totalorder %s19, 0
    %s22 = sadd.s32 %s21, 1
    %s23 = scalar_select %p20, %s21, %s22
    %p26 = pneg %p20
    %p27 = scmp.eq.s32.totalorder %s11, 1
    %p28 = por %p26, %p27
    %p29 = scmp.ne.s32.totalorder %s21, %s24
    %p30 = scmp.eq.s32.totalorder %s11, 0
    %p31 = por %p29, %p30
    %p32 = scmp.ne.s32.totalorder %s21, %s24
    %p33 = scmp.eq.s32.totalorder %s16, 1
    %p34 = por %p32, %p33
    %p35 = scmp.ne.s32.totalorder %s24, %s25
    %p36 = scmp.eq.s32.totalorder %s16, 0
    %p37 = por %p35, %p36
    %p38 = scmp.ne.s32.totalorder %s24, %s25
    %p39 = scmp.eq.s32.totalorder %s17, 1
    %p40 = por %p38, %p39
    %p42 = scmp.ne.s32.totalorder %s25, %s41
    %p43 = scmp.eq.s32.totalorder %s17, 0
    %p44 = por %p42, %p43
    %s45 = ssub.s32 %s11, %s18
    %p46 = scmp.eq.s32.totalorder %s45, 0
    %s48 = sadd.s32 %s47, 1
    %s49 = scalar_select %p46, %s47, %s48
    %p52 = pneg %p46
    %p53 = scmp.eq.s32.totalorder %s11, 1
    %p54 = por %p52, %p53
    %p55 = scmp.ne.s32.totalorder %s47, %s50
    %p56 = scmp.eq.s32.totalorder %s11, 0
    %p57 = por %p55, %p56
    %p58 = scmp.ne.s32.totalorder %s47, %s50
    %p59 = scmp.eq.s32.totalorder %s16, 1
    %p60 = por %p58, %p59
    %p61 = scmp.ne.s32.totalorder %s50, %s51
    %p62 = scmp.eq.s32.totalorder %s16, 0
    %p63 = por %p61, %p62
    %p64 = scmp.ne.s32.totalorder %s50, %s51
    %p65 = scmp.eq.s32.totalorder %s17, 1
    %p66 = por %p64, %p65
    %p68 = scmp.ne.s32.totalorder %s51, %s67
    %p69 = scmp.eq.s32.totalorder %s17, 0
    %p70 = por %p68, %p69
    %s72 = sadd.s32 %s71, 1
    %p75 = scmp.eq.s32.totalorder %s11, 1
    %p76 = scmp.ne.s32.totalorder %s71, %s73
    %p77 = scmp.eq.s32.totalorder %s11, 0
    %p78 = por %p76, %p77
    %p79 = scmp.ne.s32.totalorder %s71, %s73
    %p80 = scmp.eq.s32.totalorder %s16, 1
    %p81 = por %p79, %p80
    %p82 = scmp.ne.s32.totalorder %s73, %s74
    %p83 = scmp.eq.s32.totalorder %s16, 0
    %p84 = por %p82, %p83
    %p85 = scmp.ne.s32.totalorder %s73, %s74
    %p86 = scmp.eq.s32.totalorder %s17, 1
    %p87 = por %p85, %p86
    %p89 = scmp.ne.s32.totalorder %s74, %s88
    %p90 = scmp.eq.s32.totalorder %s17, 0
    %p91 = por %p89, %p90
    %s93 = sadd.s32 %s92, 1
    %p96 = scmp.eq.s32.totalorder %s11, 1
    %p97 = scmp.ne.s32.totalorder %s92, %s94
    %p98 = scmp.eq.s32.totalorder %s11, 0
    %p99 = por %p97, %p98
    %p100 = scmp.ne.s32.totalorder %s92, %s94
    %p101 = scmp.eq.s32.totalorder %s16, 1
    %p102 = por %p100, %p101
    %p103 = scmp.ne.s32.totalorder %s94, %s95
    %p104 = scmp.eq.s32.totalorder %s16, 0
    %p105 = por %p103, %p104
    %p106 = scmp.ne.s32.totalorder %s94, %s95
    %p107 = scmp.eq.s32.totalorder %s17, 1
    %p108 = por %p106, %p107
    %p110 = scmp.ne.s32.totalorder %s95, %s109
    %p111 = scmp.eq.s32.totalorder %s17, 0
    %p112 = por %p110, %p111
    %s114 = sadd.s32 %s113, 1
    %p117 = scmp.eq.s32.totalorder %s11, 1
    %p118 = scmp.ne.s32.totalorder %s113, %s115
    %p119 = scmp.eq.s32.totalorder %s11, 0
    %p120 = por %p118, %p119
    %p121 = scmp.ne.s32.totalorder %s113, %s115
    %p122 = scmp.eq.s32.totalorder %s16, 1
    %p123 = por %p121, %p122
    %p124 = scmp.ne.s32.totalorder %s115, %s116
    %p125 = scmp.eq.s32.totalorder %s16, 0
    %p126 = por %p124, %p125
    %p127 = scmp.ne.s32.totalorder %s115, %s116
    %p128 = scmp.eq.s32.totalorder %s17, 1
    %p129 = por %p127, %p128
    %p131 = scmp.ne.s32.totalorder %s116, %s130
    %p132 = scmp.eq.s32.totalorder %s17, 0
    %p133 = por %p131, %p132
    %s134 = ssub.s32 %s11, %s18
    %p135 = scmp.eq.s32.totalorder %s134, 0
    %s137 = sadd.s32 %s136, 1
    %s138 = scalar_select %p135, %s136, %s137
    %p141 = pneg %p135
    %p142 = scmp.eq.s32.totalorder %s11, 1
    %p143 = por %p141, %p142
    %p144 = scmp.ne.s32.totalorder %s136, %s139
    %p145 = scmp.eq.s32.totalorder %s11, 0
    %p146 = por %p144, %p145
    %p147 = scmp.ne.s32.totalorder %s136, %s139
    %p148 = scmp.eq.s32.totalorder %s16, 1
    %p149 = por %p147, %p148
    %p150 = scmp.ne.s32.totalorder %s139, %s140
    %p151 = scmp.eq.s32.totalorder %s16, 0
    %p152 = por %p150, %p151
    %p153 = scmp.ne.s32.totalorder %s139, %s140
    %p154 = scmp.eq.s32.totalorder %s17, 1
    %p155 = por %p153, %p154
    %p157 = scmp.ne.s32.totalorder %s140, %s156
    %p158 = scmp.eq.s32.totalorder %s17, 0
    %p159 = por %p157, %p158
    %p160 = scmp.le.s32.totalorder 1, %s11
    %p161 = scmp.lt.s32.totalorder %s11, 3
    %p162 = pnand %p160, %p161
    %p163 = pneg %p162
    // Predicated region
    $region9: #{gnn_forward.2} parent=5 // pred_check
      _
    $region10: #{gnn_forward.2} parent=5 // pred_check_branch
      %165 = sbr.rel (%p162) target = $region12
    $region11: #{gnn_forward.2} parent=5 // pred_region
      %s166 = ssub.s32 %s11, 1
      // Predicated region
      $region13: #{gnn_forward.2} parent=11 // pred_check
        %p167 = pneg %p84
      $region14: #{gnn_forward.2} parent=11 // pred_check_branch
        %169 = sbr.rel (%p167) target = $region16
      $region15: #{gnn_forward.2} parent=11 // pred_region
        _
      $region16: #{gnn_forward.2} parent=11 // pred_fallthru
        _
      // Predicated region
      $region17: #{gnn_forward.2} parent=11 // pred_check
        %p170 = pneg %p105
      $region18: #{gnn_forward.2} parent=11 // pred_check_branch
        %172 = sbr.rel (%p170) target = $region20
      $region19: #{gnn_forward.2} parent=11 // pred_region
        _
      $region20: #{gnn_forward.2} parent=11 // pred_fallthru
        _
      // Predicated region
      $region21: #{gnn_forward.2} parent=11 // pred_check
        %p173 = pneg %p126
      $region22: #{gnn_forward.2} parent=11 // pred_check_branch
        %175 = sbr.rel (%p173) target = $region24
      $region23: #{gnn_forward.2} parent=11 // pred_region
        _
      $region24: #{gnn_forward.2} parent=11 // pred_fallthru
        _
    $region12: #{gnn_forward.2} parent=5 // pred_fallthru
      _
    %p176 = scmp.lt.s32.totalorder %s11, 2
    // Predicated region
    $region25: #{gnn_forward.2} parent=5 // pred_check
      %p177 = pneg %p176
    $region26: #{gnn_forward.2} parent=5 // pred_check_branch
      %179 = sbr.rel (%p177) target = $region28
    $region27: #{gnn_forward.2} parent=5 // pred_region
      // Predicated region
      $region29: #{gnn_forward.2} parent=27 // pred_check
        %p180 = pneg %p31
      $region30: #{gnn_forward.2} parent=27 // pred_check_branch
        %182 = sbr.rel (%p180) target = $region32
      $region31: #{gnn_forward.2} parent=27 // pred_region
        %s183 = smul.u32 16, %s11
        %p184 = scmp.lt.s32.totalorder %s183, 31
        %s185 = scalar_select %p184, %s183, 31
        %s186 = smul.addr %s185, 2
        %s187 = smul.addr %s186, 4
        %s188 = scalar_lea.vmem %s0, %s187
        %s189 = smul.u32 16, %s11
      $region32: #{gnn_forward.2} parent=27 // pred_fallthru
        _
      // Predicated region
      $region33: #{gnn_forward.2} parent=27 // pred_check
        %p190 = pneg %p57
      $region34: #{gnn_forward.2} parent=27 // pred_check_branch
        %192 = sbr.rel (%p190) target = $region36
      $region35: #{gnn_forward.2} parent=27 // pred_region
        %s193 = smul.u32 16, %s11
        %p194 = scmp.lt.s32.totalorder %s193, 31
        %s195 = scalar_select %p194, %s193, 31
        %s196 = smul.addr %s195, 8
        %s197 = scalar_lea.vmem %s1, %s196
        %s198 = smul.u32 16, %s11
      $region36: #{gnn_forward.2} parent=27 // pred_fallthru
        _
    $region28: #{gnn_forward.2} parent=5 // pred_fallthru
      _
    %p199 = scmp.le.s32.totalorder 1, %s11
    %p200 = scmp.lt.s32.totalorder %s11, 3
    %p201 = pnand %p199, %p200
    %p202 = pneg %p201
    // Predicated region
    $region37: #{gnn_forward.2} parent=5 // pred_check
      _
    $region38: #{gnn_forward.2} parent=5 // pred_check_branch
      %204 = sbr.rel (%p201) target = $region40
    $region39: #{gnn_forward.2} parent=5 // pred_region
      %s205 = ssub.s32 %s11, 1
      %s206 = smul.u32 16, %s16
      %p207 = scmp.lt.s32.totalorder %s206, 31
      %s208 = scalar_select %p207, %s206, 31
      %s209 = smul.addr %s208, 2
      %s210 = smul.addr %s209, 4
      %s211 = scalar_lea.vmem %s0, %s210
      %p212 = pneg %p37
      %p213 = pneg %p34
      %s214 = smul.u32 16, %s16
      %p215 = scmp.lt.s32.totalorder %s214, 31
      %s216 = scalar_select %p215, %s214, 31
      %s217 = smul.addr %s216, 8
      %s218 = scalar_lea.vmem %s1, %s217
      %p219 = pneg %p63
      %p220 = pneg %p60
      %p221 = pneg %p84
      %p222 = pneg %p81
      %p223 = pneg %p105
      %p224 = pneg %p102
      %p225 = pneg %p126
      %p226 = pneg %p123
      %p227 = pneg %p152
      %p228 = pneg %p149
      %s229 = smul.u32 16, %s16
      %p230 = scmp.lt.s32.totalorder %s229, 31
      %s231 = scalar_select %p230, %s229, 31
      %s232 = smul.addr %s231, 4
      %s233 = scalar_lea.vmem %s5, %s232
      %s234 = smul.u32 16, %s16
      %p235 = scmp.lt.s32.totalorder %s234, 31
      %s236 = scalar_select %p235, %s234, 31
      %s237 = smul.addr %s236, 2
      %s238 = smul.addr %s237, 4
      %s239 = scalar_lea.vmem %s0, %s238
      %s240 = smul.u32 16, %s16
      %s241 = smul.u32 16, %s16
      %p242 = scmp.lt.s32.totalorder %s241, 31
      %s243 = scalar_select %p242, %s241, 31
      %s244 = smul.addr %s243, 8
      %s245 = scalar_lea.vmem %s1, %s244
      %s246 = smul.u32 16, %s16
      %s247 = smul.u32 16, %s16
      %p248 = scmp.lt.s32.totalorder %s247, 31
      %s249 = scalar_select %p248, %s247, 31
      %s250 = smul.addr %s249, 4
      %s251 = scalar_lea.vmem %s5, %s250
      %s252 = smul.u32 16, %s16
      %v253 = vld [vmem:[%s239] sm:$0xff]
      %v254 = vld [vmem:[%s239 + $0x8] sm:$0xff]
      %v255 = vld [vmem:[%s239 + $0x10] sm:$0xff]
      %v256 = vld [vmem:[%s239 + $0x18] sm:$0xff]
      %v257 = vld [vmem:[%s239 + $0x20] sm:$0xff]
      %v258 = vld [vmem:[%s239 + $0x28] sm:$0xff]
      %v259 = vld [vmem:[%s239 + $0x30] sm:$0xff]
      %v260 = vld [vmem:[%s239 + $0x38] sm:$0xff]
      %v261 = vld [vmem:[%s239 + $0x40] sm:$0xff]
      %v262 = vld [vmem:[%s239 + $0x48] sm:$0xff]
      %v263 = vld [vmem:[%s239 + $0x50] sm:$0xff]
      %v264 = vld [vmem:[%s239 + $0x58] sm:$0xff]
      %v265 = vld [vmem:[%s239 + $0x60] sm:$0xff]
      %v266 = vld [vmem:[%s239 + $0x68] sm:$0xff]
      %v267 = vld [vmem:[%s239 + $0x70] sm:$0xff]
      %v268 = vld [vmem:[%s239 + $0x78] sm:$0xff]
      %v269 = vld [vmem:[%s2] sm:$0xf]
      %v270 = vld [vmem:[%s2 + $0x4] sm:$0xf]
      %v271 = vld [vmem:[%s2 + $0x8] sm:$0xf]
      %v272 = vld [vmem:[%s2 + $0xc] sm:$0xf]
      %v273 = vld [vmem:[%s2 + $0x10] sm:$0xf]
      %v274 = vld [vmem:[%s2 + $0x14] sm:$0xf]
      %v275 = vld [vmem:[%s2 + $0x18] sm:$0xf]
      %v276 = vld [vmem:[%s2 + $0x1c] sm:$0xf]
      %v277 = vld [vmem:[%s2 + $0x20] sm:$0xf]
      %v278 = vld [vmem:[%s2 + $0x24] sm:$0xf]
      %v279 = vld [vmem:[%s2 + $0x28] sm:$0xf]
      %v280 = vld [vmem:[%s2 + $0x2c] sm:$0xf]
      %v281 = vld [vmem:[%s2 + $0x30] sm:$0xf]
      %v282 = vld [vmem:[%s2 + $0x34] sm:$0xf]
      %v283 = vld [vmem:[%s2 + $0x38] sm:$0xf]
      %v284 = vld [vmem:[%s2 + $0x3c] sm:$0xf]
      %v285 = vld [vmem:[%s2 + $0x40] sm:$0xf]
      %v286 = vld [vmem:[%s2 + $0x44] sm:$0xf]
      %v287 = vld [vmem:[%s2 + $0x48] sm:$0xf]
      %v288 = vld [vmem:[%s2 + $0x4c] sm:$0xf]
      %v289 = vld [vmem:[%s2 + $0x50] sm:$0xf]
      %v290 = vld [vmem:[%s2 + $0x54] sm:$0xf]
      %v291 = vld [vmem:[%s2 + $0x58] sm:$0xf]
      %v292 = vld [vmem:[%s2 + $0x5c] sm:$0xf]
      %v293 = vld [vmem:[%s2 + $0x60] sm:$0xf]
      %v294 = vld [vmem:[%s2 + $0x64] sm:$0xf]
      %v295 = vld [vmem:[%s2 + $0x68] sm:$0xf]
      %v296 = vld [vmem:[%s2 + $0x6c] sm:$0xf]
      %v297 = vld [vmem:[%s2 + $0x70] sm:$0xf]
      %v298 = vld [vmem:[%s2 + $0x74] sm:$0xf]
      %v299 = vld [vmem:[%s2 + $0x78] sm:$0xf]
      %v300 = vld [vmem:[%s2 + $0x7c] sm:$0xf]
      %v317 = vunpack.c.l.b16 %v253
      %v318 = vunpack.c.h.b16 %v253
      %v319 = vunpack.c.l.b16 %v254
      %v320 = vunpack.c.h.b16 %v254
      %v321 = vunpack.c.l.b16 %v255
      %v322 = vunpack.c.h.b16 %v255
      %v323 = vunpack.c.l.b16 %v256
      %v324 = vunpack.c.h.b16 %v256
      %v325 = vunpack.c.l.b16 %v257
      %v326 = vunpack.c.h.b16 %v257
      %v327 = vunpack.c.l.b16 %v258
      %v328 = vunpack.c.h.b16 %v258
      %v329 = vunpack.c.l.b16 %v259
      %v330 = vunpack.c.h.b16 %v259
      %v331 = vunpack.c.l.b16 %v260
      %v332 = vunpack.c.h.b16 %v260
      %v333 = vunpack.c.l.b16 %v261
      %v334 = vunpack.c.h.b16 %v261
      %v335 = vunpack.c.l.b16 %v262
      %v336 = vunpack.c.h.b16 %v262
      %v337 = vunpack.c.l.b16 %v263
      %v338 = vunpack.c.h.b16 %v263
      %v339 = vunpack.c.l.b16 %v264
      %v340 = vunpack.c.h.b16 %v264
      %v341 = vunpack.c.l.b16 %v265
      %v342 = vunpack.c.h.b16 %v265
      %v343 = vunpack.c.l.b16 %v266
      %v344 = vunpack.c.h.b16 %v266
      %v345 = vunpack.c.l.b16 %v267
      %v346 = vunpack.c.h.b16 %v267
      %v347 = vunpack.c.l.b16 %v268
      %v348 = vunpack.c.h.b16 %v268
      %v349 = vpack.c.b16 %v319, %v317
      %v350 = vpack.c.b16 %v320, %v318
      %v351 = vpack.c.b16 %v323, %v321
      %v352 = vpack.c.b16 %v324, %v322
      %v353 = vpack.c.b16 %v327, %v325
      %v354 = vpack.c.b16 %v328, %v326
      %v355 = vpack.c.b16 %v331, %v329
      %v356 = vpack.c.b16 %v332, %v330
      %v357 = vpack.c.b16 %v335, %v333
      %v358 = vpack.c.b16 %v336, %v334
      %v359 = vpack.c.b16 %v339, %v337
      %v360 = vpack.c.b16 %v340, %v338
      %v361 = vpack.c.b16 %v343, %v341
      %v362 = vpack.c.b16 %v344, %v342
      %v363 = vpack.c.b16 %v347, %v345
      %v364 = vpack.c.b16 %v348, %v346
      %v413 = vunpack.c.l.b16 %v269
      %v414 = vunpack.c.l.b16 %v270
      %v415 = vunpack.c.l.b16 %v271
      %v416 = vunpack.c.l.b16 %v272
      %v417 = vunpack.c.l.b16 %v273
      %v418 = vunpack.c.l.b16 %v274
      %v419 = vunpack.c.l.b16 %v275
      %v420 = vunpack.c.l.b16 %v276
      %v421 = vunpack.c.l.b16 %v277
      %v422 = vunpack.c.l.b16 %v278
      %v423 = vunpack.c.l.b16 %v279
      %v424 = vunpack.c.l.b16 %v280
      %v425 = vunpack.c.l.b16 %v281
      %v426 = vunpack.c.l.b16 %v282
      %v427 = vunpack.c.l.b16 %v283
      %v428 = vunpack.c.l.b16 %v284
      %v429 = vunpack.c.l.b16 %v285
      %v430 = vunpack.c.l.b16 %v286
      %v431 = vunpack.c.l.b16 %v287
      %v432 = vunpack.c.l.b16 %v288
      %v433 = vunpack.c.l.b16 %v289
      %v434 = vunpack.c.l.b16 %v290
      %v435 = vunpack.c.l.b16 %v291
      %v436 = vunpack.c.l.b16 %v292
      %v437 = vunpack.c.l.b16 %v293
      %v438 = vunpack.c.l.b16 %v294
      %v439 = vunpack.c.l.b16 %v295
      %v440 = vunpack.c.l.b16 %v296
      %v441 = vunpack.c.l.b16 %v297
      %v442 = vunpack.c.l.b16 %v298
      %v443 = vunpack.c.l.b16 %v299
      %v444 = vunpack.c.l.b16 %v300
      %v445 = vpack.c.b16 %v414, %v413
      %v446 = vpack.c.b16 %v416, %v415
      %v447 = vpack.c.b16 %v418, %v417
      %v448 = vpack.c.b16 %v420, %v419
      %v449 = vpack.c.b16 %v422, %v421
      %v450 = vpack.c.b16 %v424, %v423
      %v451 = vpack.c.b16 %v426, %v425
      %v452 = vpack.c.b16 %v428, %v427
      %v453 = vpack.c.b16 %v430, %v429
      %v454 = vpack.c.b16 %v432, %v431
      %v455 = vpack.c.b16 %v434, %v433
      %v456 = vpack.c.b16 %v436, %v435
      %v457 = vpack.c.b16 %v438, %v437
      %v458 = vpack.c.b16 %v440, %v439
      %v459 = vpack.c.b16 %v442, %v441
      %v460 = vpack.c.b16 %v444, %v443
      %477 = vmatpush.bf16.msra.mxu0 %v452
      %478 = vmatpush.bf16.msra.mxu0 %v451
      %479 = vmatpush.bf16.msra.mxu0 %v450
      %480 = vmatpush.bf16.msra.mxu0 %v449
      %481 = vmatpush.bf16.msra.mxu0 %v448
      %482 = vmatpush.bf16.msra.mxu0 %v447
      %483 = vmatpush.bf16.msra.mxu0 %v446
      %484 = vmatpush.bf16.msra.mxu0 %v445
      %485 = vmatmul.bf16.gmra.mxu0 %v349
      %v486 = vpop.f32.mrf.mxu0
      %v487 = vadd.f32 0.0, %v486
      %v488 = vpop.f32.mrf.mxu0
      %v489 = vadd.f32 0.0, %v488
      %490 = vmatmul.bf16.gmra.mxu0 %v351
      %v491 = vpop.f32.mrf.mxu0
      %v492 = vadd.f32 0.0, %v491
      %v493 = vpop.f32.mrf.mxu0
      %v494 = vadd.f32 0.0, %v493
      %495 = vmatmul.bf16.gmra.mxu0 %v353
      %v496 = vpop.f32.mrf.mxu0
      %v497 = vadd.f32 0.0, %v496
      %v498 = vpop.f32.mrf.mxu0
      %v499 = vadd.f32 0.0, %v498
      %500 = vmatmul.bf16.gmra.mxu0 %v355
      %v501 = vpop.f32.mrf.mxu0
      %v502 = vadd.f32 0.0, %v501
      %v503 = vpop.f32.mrf.mxu0
      %v504 = vadd.f32 0.0, %v503
      %505 = vmatmul.bf16.gmra.mxu0 %v357
      %v506 = vpop.f32.mrf.mxu0
      %v507 = vadd.f32 0.0, %v506
      %v508 = vpop.f32.mrf.mxu0
      %v509 = vadd.f32 0.0, %v508
      %510 = vmatmul.bf16.gmra.mxu0 %v359
      %v511 = vpop.f32.mrf.mxu0
      %v512 = vadd.f32 0.0, %v511
      %v513 = vpop.f32.mrf.mxu0
      %v514 = vadd.f32 0.0, %v513
      %515 = vmatmul.bf16.gmra.mxu0 %v361
      %v516 = vpop.f32.mrf.mxu0
      %v517 = vadd.f32 0.0, %v516
      %v518 = vpop.f32.mrf.mxu0
      %v519 = vadd.f32 0.0, %v518
      %520 = vmatmul.bf16.gmra.mxu0 %v363
      %v521 = vpop.f32.mrf.mxu0
      %v522 = vadd.f32 0.0, %v521
      %v523 = vpop.f32.mrf.mxu0
      %v524 = vadd.f32 0.0, %v523
      %525 = vdwg.mxu0
      %526 = vmatpush.bf16.msra.mxu0 %v460
      %527 = vmatpush.bf16.msra.mxu0 %v459
      %528 = vmatpush.bf16.msra.mxu0 %v458
      %529 = vmatpush.bf16.msra.mxu0 %v457
      %530 = vmatpush.bf16.msra.mxu0 %v456
      %531 = vmatpush.bf16.msra.mxu0 %v455
      %532 = vmatpush.bf16.msra.mxu0 %v454
      %533 = vmatpush.bf16.msra.mxu0 %v453
      %534 = vmatmul.bf16.gmra.mxu0 %v350
      %v535 = vpop.f32.mrf.mxu0
      %v536 = vadd.f32 %v487, %v535
      %v537 = vpop.f32.mrf.mxu0
      %v538 = vadd.f32 %v489, %v537
      %539 = vmatmul.bf16.gmra.mxu0 %v352
      %v540 = vpop.f32.mrf.mxu0
      %v541 = vadd.f32 %v492, %v540
      %v542 = vpop.f32.mrf.mxu0
      %v543 = vadd.f32 %v494, %v542
      %544 = vmatmul.bf16.gmra.mxu0 %v354
      %v545 = vpop.f32.mrf.mxu0
      %v546 = vadd.f32 %v497, %v545
      %v547 = vpop.f32.mrf.mxu0
      %v548 = vadd.f32 %v499, %v547
      %549 = vmatmul.bf16.gmra.mxu0 %v356
      %v550 = vpop.f32.mrf.mxu0
      %v551 = vadd.f32 %v502, %v550
      %v552 = vpop.f32.mrf.mxu0
      %v553 = vadd.f32 %v504, %v552
      %554 = vmatmul.bf16.gmra.mxu0 %v358
      %v555 = vpop.f32.mrf.mxu0
      %v556 = vadd.f32 %v507, %v555
      %v557 = vpop.f32.mrf.mxu0
      %v558 = vadd.f32 %v509, %v557
      %559 = vmatmul.bf16.gmra.mxu0 %v360
      %v560 = vpop.f32.mrf.mxu0
      %v561 = vadd.f32 %v512, %v560
      %v562 = vpop.f32.mrf.mxu0
      %v563 = vadd.f32 %v514, %v562
      %564 = vmatmul.bf16.gmra.mxu0 %v362
      %v565 = vpop.f32.mrf.mxu0
      %v566 = vadd.f32 %v517, %v565
      %v567 = vpop.f32.mrf.mxu0
      %v568 = vadd.f32 %v519, %v567
      %569 = vmatmul.bf16.gmra.mxu0 %v364
      %v570 = vpop.f32.mrf.mxu0
      %v571 = vadd.f32 %v522, %v570
      %v572 = vpop.f32.mrf.mxu0
      %v573 = vadd.f32 %v524, %v572
      %574 = vdwg.mxu0
      %v575 = vpack.c.bf16 %v538, %v536
      %v576 = vpack.c.bf16 %v543, %v541
      %v577 = vpack.c.bf16 %v548, %v546
      %v578 = vpack.c.bf16 %v553, %v551
      %v579 = vpack.c.bf16 %v558, %v556
      %v580 = vpack.c.bf16 %v563, %v561
      %v581 = vpack.c.bf16 %v568, %v566
      %v582 = vpack.c.bf16 %v573, %v571
      %v583 = vld [vmem:[%s3] sm:$0xf]
      %v584 = vld [vmem:[%s3 + $0x4] sm:$0xf]
      %v585 = vld [vmem:[%s3 + $0x8] sm:$0xf]
      %v586 = vld [vmem:[%s3 + $0xc] sm:$0xf]
      %v587 = vld [vmem:[%s3 + $0x10] sm:$0xf]
      %v588 = vld [vmem:[%s3 + $0x14] sm:$0xf]
      %v589 = vld [vmem:[%s3 + $0x18] sm:$0xf]
      %v590 = vld [vmem:[%s3 + $0x1c] sm:$0xf]
      %v591 = vld [vmem:[%s3 + $0x20] sm:$0xf]
      %v592 = vld [vmem:[%s3 + $0x24] sm:$0xf]
      %v593 = vld [vmem:[%s3 + $0x28] sm:$0xf]
      %v594 = vld [vmem:[%s3 + $0x2c] sm:$0xf]
      %v595 = vld [vmem:[%s3 + $0x30] sm:$0xf]
      %v596 = vld [vmem:[%s3 + $0x34] sm:$0xf]
      %v597 = vld [vmem:[%s3 + $0x38] sm:$0xf]
      %v598 = vld [vmem:[%s3 + $0x3c] sm:$0xf]
      %v615 = vunpack.c.l.b16 %v583
      %v616 = vunpack.c.l.b16 %v584
      %v617 = vunpack.c.l.b16 %v585
      %v618 = vunpack.c.l.b16 %v586
      %v619 = vunpack.c.l.b16 %v587
      %v620 = vunpack.c.l.b16 %v588
      %v621 = vunpack.c.l.b16 %v589
      %v622 = vunpack.c.l.b16 %v590
      %v623 = vunpack.c.l.b16 %v591
      %v624 = vunpack.c.l.b16 %v592
      %v625 = vunpack.c.l.b16 %v593
      %v626 = vunpack.c.l.b16 %v594
      %v627 = vunpack.c.l.b16 %v595
      %v628 = vunpack.c.l.b16 %v596
      %v629 = vunpack.c.l.b16 %v597
      %v630 = vunpack.c.l.b16 %v598
      %v631 = vpack.c.b16 %v616, %v615
      %v632 = vpack.c.b16 %v618, %v617
      %v633 = vpack.c.b16 %v620, %v619
      %v634 = vpack.c.b16 %v622, %v621
      %v635 = vpack.c.b16 %v624, %v623
      %v636 = vpack.c.b16 %v626, %v625
      %v637 = vpack.c.b16 %v628, %v627
      %v638 = vpack.c.b16 %v630, %v629
      %647 = vmatpush.bf16.msra.mxu0 %v638
      %648 = vmatpush.bf16.msra.mxu0 %v637
      %649 = vmatpush.bf16.msra.mxu0 %v636
      %650 = vmatpush.bf16.msra.mxu0 %v635
      %651 = vmatpush.bf16.msra.mxu0 %v634
      %652 = vmatpush.bf16.msra.mxu0 %v633
      %653 = vmatpush.bf16.msra.mxu0 %v632
      %654 = vmatpush.bf16.msra.mxu0 %v631
      %655 = vmatmul.bf16.gmra.mxu0 %v575
      %v656 = vpop.f32.mrf.mxu0
      %v657 = vadd.f32 0.0, %v656
      %v658 = vpop.f32.mrf.mxu0
      %v659 = vadd.f32 0.0, %v658
      %660 = vmatmul.bf16.gmra.mxu0 %v576
      %v661 = vpop.f32.mrf.mxu0
      %v662 = vadd.f32 0.0, %v661
      %v663 = vpop.f32.mrf.mxu0
      %v664 = vadd.f32 0.0, %v663
      %665 = vmatmul.bf16.gmra.mxu0 %v577
      %v666 = vpop.f32.mrf.mxu0
      %v667 = vadd.f32 0.0, %v666
      %v668 = vpop.f32.mrf.mxu0
      %v669 = vadd.f32 0.0, %v668
      %670 = vmatmul.bf16.gmra.mxu0 %v578
      %v671 = vpop.f32.mrf.mxu0
      %v672 = vadd.f32 0.0, %v671
      %v673 = vpop.f32.mrf.mxu0
      %v674 = vadd.f32 0.0, %v673
      %675 = vmatmul.bf16.gmra.mxu0 %v579
      %v676 = vpop.f32.mrf.mxu0
      %v677 = vadd.f32 0.0, %v676
      %v678 = vpop.f32.mrf.mxu0
      %v679 = vadd.f32 0.0, %v678
      %680 = vmatmul.bf16.gmra.mxu0 %v580
      %v681 = vpop.f32.mrf.mxu0
      %v682 = vadd.f32 0.0, %v681
      %v683 = vpop.f32.mrf.mxu0
      %v684 = vadd.f32 0.0, %v683
      %685 = vmatmul.bf16.gmra.mxu0 %v581
      %v686 = vpop.f32.mrf.mxu0
      %v687 = vadd.f32 0.0, %v686
      %v688 = vpop.f32.mrf.mxu0
      %v689 = vadd.f32 0.0, %v688
      %690 = vmatmul.bf16.gmra.mxu0 %v582
      %v691 = vpop.f32.mrf.mxu0
      %v692 = vadd.f32 0.0, %v691
      %v693 = vpop.f32.mrf.mxu0
      %v694 = vadd.f32 0.0, %v693
      %695 = vdwg.mxu0
      %v696 = vld [vmem:[%s245] sm:$0xff]
      %v697 = vld [vmem:[%s245 + $0x8] sm:$0xff]
      %v698 = vld [vmem:[%s245 + $0x10] sm:$0xff]
      %v699 = vld [vmem:[%s245 + $0x18] sm:$0xff]
      %v700 = vld [vmem:[%s245 + $0x20] sm:$0xff]
      %v701 = vld [vmem:[%s245 + $0x28] sm:$0xff]
      %v702 = vld [vmem:[%s245 + $0x30] sm:$0xff]
      %v703 = vld [vmem:[%s245 + $0x38] sm:$0xff]
      %v704 = vld [vmem:[%s245 + $0x40] sm:$0xff]
      %v705 = vld [vmem:[%s245 + $0x48] sm:$0xff]
      %v706 = vld [vmem:[%s245 + $0x50] sm:$0xff]
      %v707 = vld [vmem:[%s245 + $0x58] sm:$0xff]
      %v708 = vld [vmem:[%s245 + $0x60] sm:$0xff]
      %v709 = vld [vmem:[%s245 + $0x68] sm:$0xff]
      %v710 = vld [vmem:[%s245 + $0x70] sm:$0xff]
      %v711 = vld [vmem:[%s245 + $0x78] sm:$0xff]
      %713 = vset.pattern.permute.xlu0 0
      %714 = vperm.xlu0 %713, %v696
      %v715 = vpop.permute.xlu0 %714
      %718 = vset.pattern.permute.xlu0 0
      %719 = vperm.xlu0 %718, %v697
      %v720 = vpop.permute.xlu0 %719
      %723 = vset.pattern.permute.xlu0 0
      %724 = vperm.xlu0 %723, %v698
      %v725 = vpop.permute.xlu0 %724
      %728 = vset.pattern.permute.xlu0 0
      %729 = vperm.xlu0 %728, %v699
      %v730 = vpop.permute.xlu0 %729
      %733 = vset.pattern.permute.xlu0 0
      %734 = vperm.xlu0 %733, %v700
      %v735 = vpop.permute.xlu0 %734
      %738 = vset.pattern.permute.xlu0 0
      %739 = vperm.xlu0 %738, %v701
      %v740 = vpop.permute.xlu0 %739
      %743 = vset.pattern.permute.xlu0 0
      %744 = vperm.xlu0 %743, %v702
      %v745 = vpop.permute.xlu0 %744
      %748 = vset.pattern.permute.xlu0 0
      %749 = vperm.xlu0 %748, %v703
      %v750 = vpop.permute.xlu0 %749
      %753 = vset.pattern.permute.xlu0 0
      %754 = vperm.xlu0 %753, %v704
      %v755 = vpop.permute.xlu0 %754
      %758 = vset.pattern.permute.xlu0 0
      %759 = vperm.xlu0 %758, %v705
      %v760 = vpop.permute.xlu0 %759
      %763 = vset.pattern.permute.xlu0 0
      %764 = vperm.xlu0 %763, %v706
      %v765 = vpop.permute.xlu0 %764
      %768 = vset.pattern.permute.xlu0 0
      %769 = vperm.xlu0 %768, %v707
      %v770 = vpop.permute.xlu0 %769
      %773 = vset.pattern.permute.xlu0 0
      %774 = vperm.xlu0 %773, %v708
      %v775 = vpop.permute.xlu0 %774
      %778 = vset.pattern.permute.xlu0 0
      %779 = vperm.xlu0 %778, %v709
      %v780 = vpop.permute.xlu0 %779
      %783 = vset.pattern.permute.xlu0 0
      %784 = vperm.xlu0 %783, %v710
      %v785 = vpop.permute.xlu0 %784
      %788 = vset.pattern.permute.xlu0 0
      %789 = vperm.xlu0 %788, %v711
      %v790 = vpop.permute.xlu0 %789
      %v792 = vmul.f32 %v657, %v715
      %v793 = vmul.f32 %v659, %v720
      %v794 = vmul.f32 %v662, %v725
      %v795 = vmul.f32 %v664, %v730
      %v796 = vmul.f32 %v667, %v735
      %v797 = vmul.f32 %v669, %v740
      %v798 = vmul.f32 %v672, %v745
      %v799 = vmul.f32 %v674, %v750
      %v800 = vmul.f32 %v677, %v755
      %v801 = vmul.f32 %v679, %v760
      %v802 = vmul.f32 %v682, %v765
      %v803 = vmul.f32 %v684, %v770
      %v804 = vmul.f32 %v687, %v775
      %v805 = vmul.f32 %v689, %v780
      %v806 = vmul.f32 %v692, %v785
      %v807 = vmul.f32 %v694, %v790
      %v808 = vld [vmem:[%s4] sm:$0x1]
      %v810 = vperm.slane %v808, 0
      %v812 = vadd.f32 %v792, %v810
      %v813 = vadd.f32 %v793, %v810
      %v814 = vadd.f32 %v794, %v810
      %v815 = vadd.f32 %v795, %v810
      %v816 = vadd.f32 %v796, %v810
      %v817 = vadd.f32 %v797, %v810
      %v818 = vadd.f32 %v798, %v810
      %v819 = vadd.f32 %v799, %v810
      %v820 = vadd.f32 %v800, %v810
      %v821 = vadd.f32 %v801, %v810
      %v822 = vadd.f32 %v802, %v810
      %v823 = vadd.f32 %v803, %v810
      %v824 = vadd.f32 %v804, %v810
      %v825 = vadd.f32 %v805, %v810
      %v826 = vadd.f32 %v806, %v810
      %v827 = vadd.f32 %v807, %v810
      %v828 = vmax.f32 %v812, 0.0
      %v829 = vmax.f32 %v813, 0.0
      %v830 = vmax.f32 %v814, 0.0
      %v831 = vmax.f32 %v815, 0.0
      %v832 = vmax.f32 %v816, 0.0
      %v833 = vmax.f32 %v817, 0.0
      %v834 = vmax.f32 %v818, 0.0
      %v835 = vmax.f32 %v819, 0.0
      %v836 = vmax.f32 %v820, 0.0
      %v837 = vmax.f32 %v821, 0.0
      %v838 = vmax.f32 %v822, 0.0
      %v839 = vmax.f32 %v823, 0.0
      %v840 = vmax.f32 %v824, 0.0
      %v841 = vmax.f32 %v825, 0.0
      %v842 = vmax.f32 %v826, 0.0
      %v843 = vmax.f32 %v827, 0.0
      %v844 = vmul.f32 %v828, %v715
      %v845 = vmul.f32 %v829, %v720
      %v846 = vmul.f32 %v830, %v725
      %v847 = vmul.f32 %v831, %v730
      %v848 = vmul.f32 %v832, %v735
      %v849 = vmul.f32 %v833, %v740
      %v850 = vmul.f32 %v834, %v745
      %v851 = vmul.f32 %v835, %v750
      %v852 = vmul.f32 %v836, %v755
      %v853 = vmul.f32 %v837, %v760
      %v854 = vmul.f32 %v838, %v765
      %v855 = vmul.f32 %v839, %v770
      %v856 = vmul.f32 %v840, %v775
      %v857 = vmul.f32 %v841, %v780
      %v858 = vmul.f32 %v842, %v785
      %v859 = vmul.f32 %v843, %v790
      %v860 = vpack.c.bf16 %v844, %v844
      %v861 = vpack.c.bf16 %v845, %v845
      %v862 = vpack.c.bf16 %v846, %v846
      %v863 = vpack.c.bf16 %v847, %v847
      %v864 = vpack.c.bf16 %v848, %v848
      %v865 = vpack.c.bf16 %v849, %v849
      %v866 = vpack.c.bf16 %v850, %v850
      %v867 = vpack.c.bf16 %v851, %v851
      %v868 = vpack.c.bf16 %v852, %v852
      %v869 = vpack.c.bf16 %v853, %v853
      %v870 = vpack.c.bf16 %v854, %v854
      %v871 = vpack.c.bf16 %v855, %v855
      %v872 = vpack.c.bf16 %v856, %v856
      %v873 = vpack.c.bf16 %v857, %v857
      %v874 = vpack.c.bf16 %v858, %v858
      %v875 = vpack.c.bf16 %v859, %v859
      %876 = vst [vmem:[%s251] sm:$0xf] %v860
      %877 = vst [vmem:[%s251 + $0x4] sm:$0xf] %v861
      %878 = vst [vmem:[%s251 + $0x8] sm:$0xf] %v862
      %879 = vst [vmem:[%s251 + $0xc] sm:$0xf] %v863
      %880 = vst [vmem:[%s251 + $0x10] sm:$0xf] %v864
      %881 = vst [vmem:[%s251 + $0x14] sm:$0xf] %v865
      %882 = vst [vmem:[%s251 + $0x18] sm:$0xf] %v866
      %883 = vst [vmem:[%s251 + $0x1c] sm:$0xf] %v867
      %884 = vst [vmem:[%s251 + $0x20] sm:$0xf] %v868
      %885 = vst [vmem:[%s251 + $0x24] sm:$0xf] %v869
      %886 = vst [vmem:[%s251 + $0x28] sm:$0xf] %v870
      %887 = vst [vmem:[%s251 + $0x2c] sm:$0xf] %v871
      %888 = vst [vmem:[%s251 + $0x30] sm:$0xf] %v872
      %889 = vst [vmem:[%s251 + $0x34] sm:$0xf] %v873
      %890 = vst [vmem:[%s251 + $0x38] sm:$0xf] %v874
      %891 = vst [vmem:[%s251 + $0x3c] sm:$0xf] %v875
      %s892 = smul.u32 16, %s16
      %p893 = scmp.lt.s32.totalorder %s892, 31
      %s894 = scalar_select %p893, %s892, 31
      %s895 = smul.addr %s894, 4
      %s896 = scalar_lea.vmem %s5, %s895
      // Predicated region
      $region41: #{gnn_forward.2} parent=39 // pred_check
        %p897 = pneg %p149
      $region42: #{gnn_forward.2} parent=39 // pred_check_branch
        %899 = sbr.rel (%p897) target = $region44
      $region43: #{gnn_forward.2} parent=39 // pred_region
        %s900 = smul.u32 16, %s16
      $region44: #{gnn_forward.2} parent=39 // pred_fallthru
        _
    $region40: #{gnn_forward.2} parent=5 // pred_fallthru
      _
    %p901 = scmp.le.s32.totalorder 2, %s11
    // Predicated region
    $region45: #{gnn_forward.2} parent=5 // pred_check
      %p902 = pneg %p901
    $region46: #{gnn_forward.2} parent=5 // pred_check_branch
      %904 = sbr.rel (%p902) target = $region48
    $region47: #{gnn_forward.2} parent=5 // pred_region
      %s905 = ssub.s32 %s11, 2
      // Predicated region
      $region49: #{gnn_forward.2} parent=47 // pred_check
        %p906 = pneg %p155
      $region50: #{gnn_forward.2} parent=47 // pred_check_branch
        %908 = sbr.rel (%p906) target = $region52
      $region51: #{gnn_forward.2} parent=47 // pred_region
        %s909 = smul.u32 16, %s17
        %p910 = scmp.lt.s32.totalorder %s909, 31
        %s911 = scalar_select %p910, %s909, 31
        %s912 = smul.addr %s911, 4
        %s913 = scalar_lea.vmem %s5, %s912
      $region52: #{gnn_forward.2} parent=47 // pred_fallthru
        _
    $region48: #{gnn_forward.2} parent=5 // pred_fallthru
      _
  $region6: #{gnn_forward.2} parent=0 // loop_footer
    %s15 = sadd.s32 1, %s11
  $region7: #{gnn_forward.2} parent=0 // loop_footer_branch
    %10 = sbr.rel target = $region3
  $region8: #{gnn_forward.2} parent=0 // loop_exit
    _

// kernel: gnn_forward.3
$region0: #{gnn_forward.3}
  #allocation0 [shape = 'u32[]', space=smem, size = 0x4, offset = 0x4, fixed_abs, tag = 'smem constant byte address 0x4 - core index']
  #allocation1 [shape = 'u32[72,128]{1,0:T(1,128)}', space=vmem, size = 0x9000, scoped, tag = 'internal scratch']
  %s0 = inlined_call_operand.vmem [shape: bf16[256,256], index: 0, kind: input, shape index: {}]
  %s1 = inlined_call_operand.vmem [shape: f32[256,1], index: 1, kind: input, shape index: {}]
  %s2 = inlined_call_operand.vmem [shape: bf16[256,128], index: 2, kind: input, shape index: {}]
  %s3 = inlined_call_operand.vmem [shape: bf16[128,128], index: 3, kind: input, shape index: {}]
  %s4 = inlined_call_operand.vmem [shape: f32[1,128], index: 4, kind: input, shape index: {}]
  %s5 = inlined_call_operand.vmem [shape: f32[256,128], index: 5, kind: output, shape index: {}]
  %s6 = sld [smem:[#allocation0]]
  $region53: #{gnn_forward.3} parent=0
    _
  %s8 = ssub.s32 1, %s6
  %s9 = scalar_select 0, %s8, %s6
  loop: start=0, step=1, limit=4
  $region2: #{gnn_forward.3} parent=0 // loop_pre_header
    _
  $region3: #{gnn_forward.3} parent=0 // loop_header
    %s11 = sphi 0, %s15
    %p12 = scmp.ge.s32.totalorder %s11, 4
    %s21 = sphi 0, %s23
    %s24 = sphi 0, %s21
    %s25 = sphi 0, %s24
    %s41 = sphi 0, %s25
    %s47 = sphi 0, %s49
    %s50 = sphi 0, %s47
    %s51 = sphi 0, %s50
    %s67 = sphi 0, %s51
    %s71 = sphi 0, %s71
    %s73 = sphi 0, %s71
    %s74 = sphi 0, %s73
    %s88 = sphi 0, %s74
    %s92 = sphi 0, %s92
    %s94 = sphi 0, %s92
    %s95 = sphi 0, %s94
    %s109 = sphi 0, %s95
    %s113 = sphi 0, %s113
    %s115 = sphi 0, %s113
    %s116 = sphi 0, %s115
    %s130 = sphi 0, %s116
    %s136 = sphi 0, %s138
    %s139 = sphi 0, %s136
    %s140 = sphi 0, %s139
    %s156 = sphi 0, %s140
  $region4: #{gnn_forward.3} parent=0 // loop_header_branch
    %14 = sbr.rel (%p12) target = $region8
  $region5: #{gnn_forward.3} parent=0 // loop_body
    %s16 = ssub.s32 %s11, 1
    %s17 = ssub.s32 %s11, 2
    %s18 = sadd.s32 %s11, 1
    %s19 = ssub.s32 %s11, %s18
    %p20 = scmp.eq.s32.totalorder %s19, 0
    %s22 = sadd.s32 %s21, 1
    %s23 = scalar_select %p20, %s21, %s22
    %p26 = pneg %p20
    %p27 = scmp.eq.s32.totalorder %s11, 1
    %p28 = por %p26, %p27
    %p29 = scmp.ne.s32.totalorder %s21, %s24
    %p30 = scmp.eq.s32.totalorder %s11, 0
    %p31 = por %p29, %p30
    %p32 = scmp.ne.s32.totalorder %s21, %s24
    %p33 = scmp.eq.s32.totalorder %s16, 1
    %p34 = por %p32, %p33
    %p35 = scmp.ne.s32.totalorder %s24, %s25
    %p36 = scmp.eq.s32.totalorder %s16, 0
    %p37 = por %p35, %p36
    %p38 = scmp.ne.s32.totalorder %s24, %s25
    %p39 = scmp.eq.s32.totalorder %s17, 1
    %p40 = por %p38, %p39
    %p42 = scmp.ne.s32.totalorder %s25, %s41
    %p43 = scmp.eq.s32.totalorder %s17, 0
    %p44 = por %p42, %p43
    %s45 = ssub.s32 %s11, %s18
    %p46 = scmp.eq.s32.totalorder %s45, 0
    %s48 = sadd.s32 %s47, 1
    %s49 = scalar_select %p46, %s47, %s48
    %p52 = pneg %p46
    %p53 = scmp.eq.s32.totalorder %s11, 1
    %p54 = por %p52, %p53
    %p55 = scmp.ne.s32.totalorder %s47, %s50
    %p56 = scmp.eq.s32.totalorder %s11, 0
    %p57 = por %p55, %p56
    %p58 = scmp.ne.s32.totalorder %s47, %s50
    %p59 = scmp.eq.s32.totalorder %s16, 1
    %p60 = por %p58, %p59
    %p61 = scmp.ne.s32.totalorder %s50, %s51
    %p62 = scmp.eq.s32.totalorder %s16, 0
    %p63 = por %p61, %p62
    %p64 = scmp.ne.s32.totalorder %s50, %s51
    %p65 = scmp.eq.s32.totalorder %s17, 1
    %p66 = por %p64, %p65
    %p68 = scmp.ne.s32.totalorder %s51, %s67
    %p69 = scmp.eq.s32.totalorder %s17, 0
    %p70 = por %p68, %p69
    %s72 = sadd.s32 %s71, 1
    %p75 = scmp.eq.s32.totalorder %s11, 1
    %p76 = scmp.ne.s32.totalorder %s71, %s73
    %p77 = scmp.eq.s32.totalorder %s11, 0
    %p78 = por %p76, %p77
    %p79 = scmp.ne.s32.totalorder %s71, %s73
    %p80 = scmp.eq.s32.totalorder %s16, 1
    %p81 = por %p79, %p80
    %p82 = scmp.ne.s32.totalorder %s73, %s74
    %p83 = scmp.eq.s32.totalorder %s16, 0
    %p84 = por %p82, %p83
    %p85 = scmp.ne.s32.totalorder %s73, %s74
    %p86 = scmp.eq.s32.totalorder %s17, 1
    %p87 = por %p85, %p86
    %p89 = scmp.ne.s32.totalorder %s74, %s88
    %p90 = scmp.eq.s32.totalorder %s17, 0
    %p91 = por %p89, %p90
    %s93 = sadd.s32 %s92, 1
    %p96 = scmp.eq.s32.totalorder %s11, 1
    %p97 = scmp.ne.s32.totalorder %s92, %s94
    %p98 = scmp.eq.s32.totalorder %s11, 0
    %p99 = por %p97, %p98
    %p100 = scmp.ne.s32.totalorder %s92, %s94
    %p101 = scmp.eq.s32.totalorder %s16, 1
    %p102 = por %p100, %p101
    %p103 = scmp.ne.s32.totalorder %s94, %s95
    %p104 = scmp.eq.s32.totalorder %s16, 0
    %p105 = por %p103, %p104
    %p106 = scmp.ne.s32.totalorder %s94, %s95
    %p107 = scmp.eq.s32.totalorder %s17, 1
    %p108 = por %p106, %p107
    %p110 = scmp.ne.s32.totalorder %s95, %s109
    %p111 = scmp.eq.s32.totalorder %s17, 0
    %p112 = por %p110, %p111
    %s114 = sadd.s32 %s113, 1
    %p117 = scmp.eq.s32.totalorder %s11, 1
    %p118 = scmp.ne.s32.totalorder %s113, %s115
    %p119 = scmp.eq.s32.totalorder %s11, 0
    %p120 = por %p118, %p119
    %p121 = scmp.ne.s32.totalorder %s113, %s115
    %p122 = scmp.eq.s32.totalorder %s16, 1
    %p123 = por %p121, %p122
    %p124 = scmp.ne.s32.totalorder %s115, %s116
    %p125 = scmp.eq.s32.totalorder %s16, 0
    %p126 = por %p124, %p125
    %p127 = scmp.ne.s32.totalorder %s115, %s116
    %p128 = scmp.eq.s32.totalorder %s17, 1
    %p129 = por %p127, %p128
    %p131 = scmp.ne.s32.totalorder %s116, %s130
    %p132 = scmp.eq.s32.totalorder %s17, 0
    %p133 = por %p131, %p132
    %s134 = ssub.s32 %s11, %s18
    %p135 = scmp.eq.s32.totalorder %s134, 0
    %s137 = sadd.s32 %s136, 1
    %s138 = scalar_select %p135, %s136, %s137
    %p141 = pneg %p135
    %p142 = scmp.eq.s32.totalorder %s11, 1
    %p143 = por %p141, %p142
    %p144 = scmp.ne.s32.totalorder %s136, %s139
    %p145 = scmp.eq.s32.totalorder %s11, 0
    %p146 = por %p144, %p145
    %p147 = scmp.ne.s32.totalorder %s136, %s139
    %p148 = scmp.eq.s32.totalorder %s16, 1
    %p149 = por %p147, %p148
    %p150 = scmp.ne.s32.totalorder %s139, %s140
    %p151 = scmp.eq.s32.totalorder %s16, 0
    %p152 = por %p150, %p151
    %p153 = scmp.ne.s32.totalorder %s139, %s140
    %p154 = scmp.eq.s32.totalorder %s17, 1
    %p155 = por %p153, %p154
    %p157 = scmp.ne.s32.totalorder %s140, %s156
    %p158 = scmp.eq.s32.totalorder %s17, 0
    %p159 = por %p157, %p158
    %p160 = scmp.le.s32.totalorder 1, %s11
    %p161 = scmp.lt.s32.totalorder %s11, 3
    %p162 = pnand %p160, %p161
    %p163 = pneg %p162
    // Predicated region
    $region9: #{gnn_forward.3} parent=5 // pred_check
      _
    $region10: #{gnn_forward.3} parent=5 // pred_check_branch
      %165 = sbr.rel (%p162) target = $region12
    $region11: #{gnn_forward.3} parent=5 // pred_region
      %s166 = ssub.s32 %s11, 1
      // Predicated region
      $region13: #{gnn_forward.3} parent=11 // pred_check
        %p167 = pneg %p84
      $region14: #{gnn_forward.3} parent=11 // pred_check_branch
        %169 = sbr.rel (%p167) target = $region16
      $region15: #{gnn_forward.3} parent=11 // pred_region
        _
      $region16: #{gnn_forward.3} parent=11 // pred_fallthru
        _
      // Predicated region
      $region17: #{gnn_forward.3} parent=11 // pred_check
        %p170 = pneg %p105
      $region18: #{gnn_forward.3} parent=11 // pred_check_branch
        %172 = sbr.rel (%p170) target = $region20
      $region19: #{gnn_forward.3} parent=11 // pred_region
        _
      $region20: #{gnn_forward.3} parent=11 // pred_fallthru
        _
      // Predicated region
      $region21: #{gnn_forward.3} parent=11 // pred_check
        %p173 = pneg %p126
      $region22: #{gnn_forward.3} parent=11 // pred_check_branch
        %175 = sbr.rel (%p173) target = $region24
      $region23: #{gnn_forward.3} parent=11 // pred_region
        _
      $region24: #{gnn_forward.3} parent=11 // pred_fallthru
        _
    $region12: #{gnn_forward.3} parent=5 // pred_fallthru
      _
    %p176 = scmp.lt.s32.totalorder %s11, 2
    // Predicated region
    $region25: #{gnn_forward.3} parent=5 // pred_check
      %p177 = pneg %p176
    $region26: #{gnn_forward.3} parent=5 // pred_check_branch
      %179 = sbr.rel (%p177) target = $region28
    $region27: #{gnn_forward.3} parent=5 // pred_region
      // Predicated region
      $region29: #{gnn_forward.3} parent=27 // pred_check
        %p180 = pneg %p31
      $region30: #{gnn_forward.3} parent=27 // pred_check_branch
        %182 = sbr.rel (%p180) target = $region32
      $region31: #{gnn_forward.3} parent=27 // pred_region
        %s183 = smul.u32 16, %s11
        %p184 = scmp.lt.s32.totalorder %s183, 31
        %s185 = scalar_select %p184, %s183, 31
        %s186 = smul.addr %s185, 2
        %s187 = smul.addr %s186, 4
        %s188 = scalar_lea.vmem %s0, %s187
        %s189 = smul.u32 16, %s11
      $region32: #{gnn_forward.3} parent=27 // pred_fallthru
        _
      // Predicated region
      $region33: #{gnn_forward.3} parent=27 // pred_check
        %p190 = pneg %p57
      $region34: #{gnn_forward.3} parent=27 // pred_check_branch
        %192 = sbr.rel (%p190) target = $region36
      $region35: #{gnn_forward.3} parent=27 // pred_region
        %s193 = smul.u32 16, %s11
        %p194 = scmp.lt.s32.totalorder %s193, 31
        %s195 = scalar_select %p194, %s193, 31
        %s196 = smul.addr %s195, 8
        %s197 = scalar_lea.vmem %s1, %s196
        %s198 = smul.u32 16, %s11
      $region36: #{gnn_forward.3} parent=27 // pred_fallthru
        _
    $region28: #{gnn_forward.3} parent=5 // pred_fallthru
      _
    %p199 = scmp.le.s32.totalorder 1, %s11
    %p200 = scmp.lt.s32.totalorder %s11, 3
    %p201 = pnand %p199, %p200
    %p202 = pneg %p201
    // Predicated region
    $region37: #{gnn_forward.3} parent=5 // pred_check
      _
    $region38: #{gnn_forward.3} parent=5 // pred_check_branch
      %204 = sbr.rel (%p201) target = $region40
    $region39: #{gnn_forward.3} parent=5 // pred_region
      %s205 = ssub.s32 %s11, 1
      %s206 = smul.u32 16, %s16
      %p207 = scmp.lt.s32.totalorder %s206, 31
      %s208 = scalar_select %p207, %s206, 31
      %s209 = smul.addr %s208, 2
      %s210 = smul.addr %s209, 4
      %s211 = scalar_lea.vmem %s0, %s210
      %p212 = pneg %p37
      %p213 = pneg %p34
      %s214 = smul.u32 16, %s16
      %p215 = scmp.lt.s32.totalorder %s214, 31
      %s216 = scalar_select %p215, %s214, 31
      %s217 = smul.addr %s216, 8
      %s218 = scalar_lea.vmem %s1, %s217
      %p219 = pneg %p63
      %p220 = pneg %p60
      %p221 = pneg %p84
      %p222 = pneg %p81
      %p223 = pneg %p105
      %p224 = pneg %p102
      %p225 = pneg %p126
      %p226 = pneg %p123
      %p227 = pneg %p152
      %p228 = pneg %p149
      %s229 = smul.u32 16, %s16
      %p230 = scmp.lt.s32.totalorder %s229, 31
      %s231 = scalar_select %p230, %s229, 31
      %s232 = smul.addr %s231, 8
      %s233 = scalar_lea.vmem %s5, %s232
      %s234 = smul.u32 16, %s16
      %p235 = scmp.lt.s32.totalorder %s234, 31
      %s236 = scalar_select %p235, %s234, 31
      %s237 = smul.addr %s236, 2
      %s238 = smul.addr %s237, 4
      %s239 = scalar_lea.vmem %s0, %s238
      %s240 = smul.u32 16, %s16
      %s241 = smul.u32 16, %s16
      %p242 = scmp.lt.s32.totalorder %s241, 31
      %s243 = scalar_select %p242, %s241, 31
      %s244 = smul.addr %s243, 8
      %s245 = scalar_lea.vmem %s1, %s244
      %s246 = smul.u32 16, %s16
      %s247 = smul.u32 16, %s16
      %p248 = scmp.lt.s32.totalorder %s247, 31
      %s249 = scalar_select %p248, %s247, 31
      %s250 = smul.addr %s249, 8
      %s251 = scalar_lea.vmem %s5, %s250
      %s252 = smul.u32 16, %s16
      %v253 = vld [vmem:[%s239] sm:$0xff]
      %v254 = vld [vmem:[%s239 + $0x8] sm:$0xff]
      %v255 = vld [vmem:[%s239 + $0x10] sm:$0xff]
      %v256 = vld [vmem:[%s239 + $0x18] sm:$0xff]
      %v257 = vld [vmem:[%s239 + $0x20] sm:$0xff]
      %v258 = vld [vmem:[%s239 + $0x28] sm:$0xff]
      %v259 = vld [vmem:[%s239 + $0x30] sm:$0xff]
      %v260 = vld [vmem:[%s239 + $0x38] sm:$0xff]
      %v261 = vld [vmem:[%s239 + $0x40] sm:$0xff]
      %v262 = vld [vmem:[%s239 + $0x48] sm:$0xff]
      %v263 = vld [vmem:[%s239 + $0x50] sm:$0xff]
      %v264 = vld [vmem:[%s239 + $0x58] sm:$0xff]
      %v265 = vld [vmem:[%s239 + $0x60] sm:$0xff]
      %v266 = vld [vmem:[%s239 + $0x68] sm:$0xff]
      %v267 = vld [vmem:[%s239 + $0x70] sm:$0xff]
      %v268 = vld [vmem:[%s239 + $0x78] sm:$0xff]
      %v269 = vld [vmem:[%s2] sm:$0xf]
      %v270 = vld [vmem:[%s2 + $0x4] sm:$0xf]
      %v271 = vld [vmem:[%s2 + $0x8] sm:$0xf]
      %v272 = vld [vmem:[%s2 + $0xc] sm:$0xf]
      %v273 = vld [vmem:[%s2 + $0x10] sm:$0xf]
      %v274 = vld [vmem:[%s2 + $0x14] sm:$0xf]
      %v275 = vld [vmem:[%s2 + $0x18] sm:$0xf]
      %v276 = vld [vmem:[%s2 + $0x1c] sm:$0xf]
      %v277 = vld [vmem:[%s2 + $0x20] sm:$0xf]
      %v278 = vld [vmem:[%s2 + $0x24] sm:$0xf]
      %v279 = vld [vmem:[%s2 + $0x28] sm:$0xf]
      %v280 = vld [vmem:[%s2 + $0x2c] sm:$0xf]
      %v281 = vld [vmem:[%s2 + $0x30] sm:$0xf]
      %v282 = vld [vmem:[%s2 + $0x34] sm:$0xf]
      %v283 = vld [vmem:[%s2 + $0x38] sm:$0xf]
      %v284 = vld [vmem:[%s2 + $0x3c] sm:$0xf]
      %v285 = vld [vmem:[%s2 + $0x40] sm:$0xf]
      %v286 = vld [vmem:[%s2 + $0x44] sm:$0xf]
      %v287 = vld [vmem:[%s2 + $0x48] sm:$0xf]
      %v288 = vld [vmem:[%s2 + $0x4c] sm:$0xf]
      %v289 = vld [vmem:[%s2 + $0x50] sm:$0xf]
      %v290 = vld [vmem:[%s2 + $0x54] sm:$0xf]
      %v291 = vld [vmem:[%s2 + $0x58] sm:$0xf]
      %v292 = vld [vmem:[%s2 + $0x5c] sm:$0xf]
      %v293 = vld [vmem:[%s2 + $0x60] sm:$0xf]
      %v294 = vld [vmem:[%s2 + $0x64] sm:$0xf]
      %v295 = vld [vmem:[%s2 + $0x68] sm:$0xf]
      %v296 = vld [vmem:[%s2 + $0x6c] sm:$0xf]
      %v297 = vld [vmem:[%s2 + $0x70] sm:$0xf]
      %v298 = vld [vmem:[%s2 + $0x74] sm:$0xf]
      %v299 = vld [vmem:[%s2 + $0x78] sm:$0xf]
      %v300 = vld [vmem:[%s2 + $0x7c] sm:$0xf]
      %v317 = vunpack.c.l.b16 %v253
      %v318 = vunpack.c.h.b16 %v253
      %v319 = vunpack.c.l.b16 %v254
      %v320 = vunpack.c.h.b16 %v254
      %v321 = vunpack.c.l.b16 %v255
      %v322 = vunpack.c.h.b16 %v255
      %v323 = vunpack.c.l.b16 %v256
      %v324 = vunpack.c.h.b16 %v256
      %v325 = vunpack.c.l.b16 %v257
      %v326 = vunpack.c.h.b16 %v257
      %v327 = vunpack.c.l.b16 %v258
      %v328 = vunpack.c.h.b16 %v258
      %v329 = vunpack.c.l.b16 %v259
      %v330 = vunpack.c.h.b16 %v259
      %v331 = vunpack.c.l.b16 %v260
      %v332 = vunpack.c.h.b16 %v260
      %v333 = vunpack.c.l.b16 %v261
      %v334 = vunpack.c.h.b16 %v261
      %v335 = vunpack.c.l.b16 %v262
      %v336 = vunpack.c.h.b16 %v262
      %v337 = vunpack.c.l.b16 %v263
      %v338 = vunpack.c.h.b16 %v263
      %v339 = vunpack.c.l.b16 %v264
      %v340 = vunpack.c.h.b16 %v264
      %v341 = vunpack.c.l.b16 %v265
      %v342 = vunpack.c.h.b16 %v265
      %v343 = vunpack.c.l.b16 %v266
      %v344 = vunpack.c.h.b16 %v266
      %v345 = vunpack.c.l.b16 %v267
      %v346 = vunpack.c.h.b16 %v267
      %v347 = vunpack.c.l.b16 %v268
      %v348 = vunpack.c.h.b16 %v268
      %v349 = vpack.c.b16 %v319, %v317
      %v350 = vpack.c.b16 %v320, %v318
      %v351 = vpack.c.b16 %v323, %v321
      %v352 = vpack.c.b16 %v324, %v322
      %v353 = vpack.c.b16 %v327, %v325
      %v354 = vpack.c.b16 %v328, %v326
      %v355 = vpack.c.b16 %v331, %v329
      %v356 = vpack.c.b16 %v332, %v330
      %v357 = vpack.c.b16 %v335, %v333
      %v358 = vpack.c.b16 %v336, %v334
      %v359 = vpack.c.b16 %v339, %v337
      %v360 = vpack.c.b16 %v340, %v338
      %v361 = vpack.c.b16 %v343, %v341
      %v362 = vpack.c.b16 %v344, %v342
      %v363 = vpack.c.b16 %v347, %v345
      %v364 = vpack.c.b16 %v348, %v346
      %v413 = vunpack.c.l.b16 %v269
      %v414 = vunpack.c.l.b16 %v270
      %v415 = vunpack.c.l.b16 %v271
      %v416 = vunpack.c.l.b16 %v272
      %v417 = vunpack.c.l.b16 %v273
      %v418 = vunpack.c.l.b16 %v274
      %v419 = vunpack.c.l.b16 %v275
      %v420 = vunpack.c.l.b16 %v276
      %v421 = vunpack.c.l.b16 %v277
      %v422 = vunpack.c.l.b16 %v278
      %v423 = vunpack.c.l.b16 %v279
      %v424 = vunpack.c.l.b16 %v280
      %v425 = vunpack.c.l.b16 %v281
      %v426 = vunpack.c.l.b16 %v282
      %v427 = vunpack.c.l.b16 %v283
      %v428 = vunpack.c.l.b16 %v284
      %v429 = vunpack.c.l.b16 %v285
      %v430 = vunpack.c.l.b16 %v286
      %v431 = vunpack.c.l.b16 %v287
      %v432 = vunpack.c.l.b16 %v288
      %v433 = vunpack.c.l.b16 %v289
      %v434 = vunpack.c.l.b16 %v290
      %v435 = vunpack.c.l.b16 %v291
      %v436 = vunpack.c.l.b16 %v292
      %v437 = vunpack.c.l.b16 %v293
      %v438 = vunpack.c.l.b16 %v294
      %v439 = vunpack.c.l.b16 %v295
      %v440 = vunpack.c.l.b16 %v296
      %v441 = vunpack.c.l.b16 %v297
      %v442 = vunpack.c.l.b16 %v298
      %v443 = vunpack.c.l.b16 %v299
      %v444 = vunpack.c.l.b16 %v300
      %v445 = vpack.c.b16 %v414, %v413
      %v446 = vpack.c.b16 %v416, %v415
      %v447 = vpack.c.b16 %v418, %v417
      %v448 = vpack.c.b16 %v420, %v419
      %v449 = vpack.c.b16 %v422, %v421
      %v450 = vpack.c.b16 %v424, %v423
      %v451 = vpack.c.b16 %v426, %v425
      %v452 = vpack.c.b16 %v428, %v427
      %v453 = vpack.c.b16 %v430, %v429
      %v454 = vpack.c.b16 %v432, %v431
      %v455 = vpack.c.b16 %v434, %v433
      %v456 = vpack.c.b16 %v436, %v435
      %v457 = vpack.c.b16 %v438, %v437
      %v458 = vpack.c.b16 %v440, %v439
      %v459 = vpack.c.b16 %v442, %v441
      %v460 = vpack.c.b16 %v444, %v443
      %477 = vmatpush.bf16.msra.mxu0 %v452
      %478 = vmatpush.bf16.msra.mxu0 %v451
      %479 = vmatpush.bf16.msra.mxu0 %v450
      %480 = vmatpush.bf16.msra.mxu0 %v449
      %481 = vmatpush.bf16.msra.mxu0 %v448
      %482 = vmatpush.bf16.msra.mxu0 %v447
      %483 = vmatpush.bf16.msra.mxu0 %v446
      %484 = vmatpush.bf16.msra.mxu0 %v445
      %485 = vmatmul.bf16.gmra.mxu0 %v349
      %v486 = vpop.f32.mrf.mxu0
      %v487 = vadd.f32 0.0, %v486
      %v488 = vpop.f32.mrf.mxu0
      %v489 = vadd.f32 0.0, %v488
      %490 = vmatmul.bf16.gmra.mxu0 %v351
      %v491 = vpop.f32.mrf.mxu0
      %v492 = vadd.f32 0.0, %v491
      %v493 = vpop.f32.mrf.mxu0
      %v494 = vadd.f32 0.0, %v493
      %495 = vmatmul.bf16.gmra.mxu0 %v353
      %v496 = vpop.f32.mrf.mxu0
      %v497 = vadd.f32 0.0, %v496
      %v498 = vpop.f32.mrf.mxu0
      %v499 = vadd.f32 0.0, %v498
      %500 = vmatmul.bf16.gmra.mxu0 %v355
      %v501 = vpop.f32.mrf.mxu0
      %v502 = vadd.f32 0.0, %v501
      %v503 = vpop.f32.mrf.mxu0
      %v504 = vadd.f32 0.0, %v503
      %505 = vmatmul.bf16.gmra.mxu0 %v357
      %v506 = vpop.f32.mrf.mxu0
      %v507 = vadd.f32 0.0, %v506
      %v508 = vpop.f32.mrf.mxu0
      %v509 = vadd.f32 0.0, %v508
      %510 = vmatmul.bf16.gmra.mxu0 %v359
      %v511 = vpop.f32.mrf.mxu0
      %v512 = vadd.f32 0.0, %v511
      %v513 = vpop.f32.mrf.mxu0
      %v514 = vadd.f32 0.0, %v513
      %515 = vmatmul.bf16.gmra.mxu0 %v361
      %v516 = vpop.f32.mrf.mxu0
      %v517 = vadd.f32 0.0, %v516
      %v518 = vpop.f32.mrf.mxu0
      %v519 = vadd.f32 0.0, %v518
      %520 = vmatmul.bf16.gmra.mxu0 %v363
      %v521 = vpop.f32.mrf.mxu0
      %v522 = vadd.f32 0.0, %v521
      %v523 = vpop.f32.mrf.mxu0
      %v524 = vadd.f32 0.0, %v523
      %525 = vdwg.mxu0
      %526 = vmatpush.bf16.msra.mxu0 %v460
      %527 = vmatpush.bf16.msra.mxu0 %v459
      %528 = vmatpush.bf16.msra.mxu0 %v458
      %529 = vmatpush.bf16.msra.mxu0 %v457
      %530 = vmatpush.bf16.msra.mxu0 %v456
      %531 = vmatpush.bf16.msra.mxu0 %v455
      %532 = vmatpush.bf16.msra.mxu0 %v454
      %533 = vmatpush.bf16.msra.mxu0 %v453
      %534 = vmatmul.bf16.gmra.mxu0 %v350
      %v535 = vpop.f32.mrf.mxu0
      %v536 = vadd.f32 %v487, %v535
      %v537 = vpop.f32.mrf.mxu0
      %v538 = vadd.f32 %v489, %v537
      %539 = vmatmul.bf16.gmra.mxu0 %v352
      %v540 = vpop.f32.mrf.mxu0
      %v541 = vadd.f32 %v492, %v540
      %v542 = vpop.f32.mrf.mxu0
      %v543 = vadd.f32 %v494, %v542
      %544 = vmatmul.bf16.gmra.mxu0 %v354
      %v545 = vpop.f32.mrf.mxu0
      %v546 = vadd.f32 %v497, %v545
      %v547 = vpop.f32.mrf.mxu0
      %v548 = vadd.f32 %v499, %v547
      %549 = vmatmul.bf16.gmra.mxu0 %v356
      %v550 = vpop.f32.mrf.mxu0
      %v551 = vadd.f32 %v502, %v550
      %v552 = vpop.f32.mrf.mxu0
      %v553 = vadd.f32 %v504, %v552
      %554 = vmatmul.bf16.gmra.mxu0 %v358
      %v555 = vpop.f32.mrf.mxu0
      %v556 = vadd.f32 %v507, %v555
      %v557 = vpop.f32.mrf.mxu0
      %v558 = vadd.f32 %v509, %v557
      %559 = vmatmul.bf16.gmra.mxu0 %v360
      %v560 = vpop.f32.mrf.mxu0
      %v561 = vadd.f32 %v512, %v560
      %v562 = vpop.f32.mrf.mxu0
      %v563 = vadd.f32 %v514, %v562
      %564 = vmatmul.bf16.gmra.mxu0 %v362
      %v565 = vpop.f32.mrf.mxu0
      %v566 = vadd.f32 %v517, %v565
      %v567 = vpop.f32.mrf.mxu0
      %v568 = vadd.f32 %v519, %v567
      %569 = vmatmul.bf16.gmra.mxu0 %v364
      %v570 = vpop.f32.mrf.mxu0
      %v571 = vadd.f32 %v522, %v570
      %v572 = vpop.f32.mrf.mxu0
      %v573 = vadd.f32 %v524, %v572
      %574 = vdwg.mxu0
      %v575 = vpack.c.bf16 %v538, %v536
      %v576 = vpack.c.bf16 %v543, %v541
      %v577 = vpack.c.bf16 %v548, %v546
      %v578 = vpack.c.bf16 %v553, %v551
      %v579 = vpack.c.bf16 %v558, %v556
      %v580 = vpack.c.bf16 %v563, %v561
      %v581 = vpack.c.bf16 %v568, %v566
      %v582 = vpack.c.bf16 %v573, %v571
      %v583 = vld [vmem:[%s3] sm:$0xf]
      %v584 = vld [vmem:[%s3 + $0x4] sm:$0xf]
      %v585 = vld [vmem:[%s3 + $0x8] sm:$0xf]
      %v586 = vld [vmem:[%s3 + $0xc] sm:$0xf]
      %v587 = vld [vmem:[%s3 + $0x10] sm:$0xf]
      %v588 = vld [vmem:[%s3 + $0x14] sm:$0xf]
      %v589 = vld [vmem:[%s3 + $0x18] sm:$0xf]
      %v590 = vld [vmem:[%s3 + $0x1c] sm:$0xf]
      %v591 = vld [vmem:[%s3 + $0x20] sm:$0xf]
      %v592 = vld [vmem:[%s3 + $0x24] sm:$0xf]
      %v593 = vld [vmem:[%s3 + $0x28] sm:$0xf]
      %v594 = vld [vmem:[%s3 + $0x2c] sm:$0xf]
      %v595 = vld [vmem:[%s3 + $0x30] sm:$0xf]
      %v596 = vld [vmem:[%s3 + $0x34] sm:$0xf]
      %v597 = vld [vmem:[%s3 + $0x38] sm:$0xf]
      %v598 = vld [vmem:[%s3 + $0x3c] sm:$0xf]
      %v615 = vunpack.c.l.b16 %v583
      %v616 = vunpack.c.l.b16 %v584
      %v617 = vunpack.c.l.b16 %v585
      %v618 = vunpack.c.l.b16 %v586
      %v619 = vunpack.c.l.b16 %v587
      %v620 = vunpack.c.l.b16 %v588
      %v621 = vunpack.c.l.b16 %v589
      %v622 = vunpack.c.l.b16 %v590
      %v623 = vunpack.c.l.b16 %v591
      %v624 = vunpack.c.l.b16 %v592
      %v625 = vunpack.c.l.b16 %v593
      %v626 = vunpack.c.l.b16 %v594
      %v627 = vunpack.c.l.b16 %v595
      %v628 = vunpack.c.l.b16 %v596
      %v629 = vunpack.c.l.b16 %v597
      %v630 = vunpack.c.l.b16 %v598
      %v631 = vpack.c.b16 %v616, %v615
      %v632 = vpack.c.b16 %v618, %v617
      %v633 = vpack.c.b16 %v620, %v619
      %v634 = vpack.c.b16 %v622, %v621
      %v635 = vpack.c.b16 %v624, %v623
      %v636 = vpack.c.b16 %v626, %v625
      %v637 = vpack.c.b16 %v628, %v627
      %v638 = vpack.c.b16 %v630, %v629
      %647 = vmatpush.bf16.msra.mxu0 %v638
      %648 = vmatpush.bf16.msra.mxu0 %v637
      %649 = vmatpush.bf16.msra.mxu0 %v636
      %650 = vmatpush.bf16.msra.mxu0 %v635
      %651 = vmatpush.bf16.msra.mxu0 %v634
      %652 = vmatpush.bf16.msra.mxu0 %v633
      %653 = vmatpush.bf16.msra.mxu0 %v632
      %654 = vmatpush.bf16.msra.mxu0 %v631
      %655 = vmatmul.bf16.gmra.mxu0 %v575
      %v656 = vpop.f32.mrf.mxu0
      %v657 = vadd.f32 0.0, %v656
      %v658 = vpop.f32.mrf.mxu0
      %v659 = vadd.f32 0.0, %v658
      %660 = vmatmul.bf16.gmra.mxu0 %v576
      %v661 = vpop.f32.mrf.mxu0
      %v662 = vadd.f32 0.0, %v661
      %v663 = vpop.f32.mrf.mxu0
      %v664 = vadd.f32 0.0, %v663
      %665 = vmatmul.bf16.gmra.mxu0 %v577
      %v666 = vpop.f32.mrf.mxu0
      %v667 = vadd.f32 0.0, %v666
      %v668 = vpop.f32.mrf.mxu0
      %v669 = vadd.f32 0.0, %v668
      %670 = vmatmul.bf16.gmra.mxu0 %v578
      %v671 = vpop.f32.mrf.mxu0
      %v672 = vadd.f32 0.0, %v671
      %v673 = vpop.f32.mrf.mxu0
      %v674 = vadd.f32 0.0, %v673
      %675 = vmatmul.bf16.gmra.mxu0 %v579
      %v676 = vpop.f32.mrf.mxu0
      %v677 = vadd.f32 0.0, %v676
      %v678 = vpop.f32.mrf.mxu0
      %v679 = vadd.f32 0.0, %v678
      %680 = vmatmul.bf16.gmra.mxu0 %v580
      %v681 = vpop.f32.mrf.mxu0
      %v682 = vadd.f32 0.0, %v681
      %v683 = vpop.f32.mrf.mxu0
      %v684 = vadd.f32 0.0, %v683
      %685 = vmatmul.bf16.gmra.mxu0 %v581
      %v686 = vpop.f32.mrf.mxu0
      %v687 = vadd.f32 0.0, %v686
      %v688 = vpop.f32.mrf.mxu0
      %v689 = vadd.f32 0.0, %v688
      %690 = vmatmul.bf16.gmra.mxu0 %v582
      %v691 = vpop.f32.mrf.mxu0
      %v692 = vadd.f32 0.0, %v691
      %v693 = vpop.f32.mrf.mxu0
      %v694 = vadd.f32 0.0, %v693
      %695 = vdwg.mxu0
      %v696 = vld [vmem:[%s245] sm:$0xff]
      %v697 = vld [vmem:[%s245 + $0x8] sm:$0xff]
      %v698 = vld [vmem:[%s245 + $0x10] sm:$0xff]
      %v699 = vld [vmem:[%s245 + $0x18] sm:$0xff]
      %v700 = vld [vmem:[%s245 + $0x20] sm:$0xff]
      %v701 = vld [vmem:[%s245 + $0x28] sm:$0xff]
      %v702 = vld [vmem:[%s245 + $0x30] sm:$0xff]
      %v703 = vld [vmem:[%s245 + $0x38] sm:$0xff]
      %v704 = vld [vmem:[%s245 + $0x40] sm:$0xff]
      %v705 = vld [vmem:[%s245 + $0x48] sm:$0xff]
      %v706 = vld [vmem:[%s245 + $0x50] sm:$0xff]
      %v707 = vld [vmem:[%s245 + $0x58] sm:$0xff]
      %v708 = vld [vmem:[%s245 + $0x60] sm:$0xff]
      %v709 = vld [vmem:[%s245 + $0x68] sm:$0xff]
      %v710 = vld [vmem:[%s245 + $0x70] sm:$0xff]
      %v711 = vld [vmem:[%s245 + $0x78] sm:$0xff]
      %713 = vset.pattern.permute.xlu0 0
      %714 = vperm.xlu0 %713, %v696
      %v715 = vpop.permute.xlu0 %714
      %718 = vset.pattern.permute.xlu0 0
      %719 = vperm.xlu0 %718, %v697
      %v720 = vpop.permute.xlu0 %719
      %723 = vset.pattern.permute.xlu0 0
      %724 = vperm.xlu0 %723, %v698
      %v725 = vpop.permute.xlu0 %724
      %728 = vset.pattern.permute.xlu0 0
      %729 = vperm.xlu0 %728, %v699
      %v730 = vpop.permute.xlu0 %729
      %733 = vset.pattern.permute.xlu0 0
      %734 = vperm.xlu0 %733, %v700
      %v735 = vpop.permute.xlu0 %734
      %738 = vset.pattern.permute.xlu0 0
      %739 = vperm.xlu0 %738, %v701
      %v740 = vpop.permute.xlu0 %739
      %743 = vset.pattern.permute.xlu0 0
      %744 = vperm.xlu0 %743, %v702
      %v745 = vpop.permute.xlu0 %744
      %748 = vset.pattern.permute.xlu0 0
      %749 = vperm.xlu0 %748, %v703
      %v750 = vpop.permute.xlu0 %749
      %753 = vset.pattern.permute.xlu0 0
      %754 = vperm.xlu0 %753, %v704
      %v755 = vpop.permute.xlu0 %754
      %758 = vset.pattern.permute.xlu0 0
      %759 = vperm.xlu0 %758, %v705
      %v760 = vpop.permute.xlu0 %759
      %763 = vset.pattern.permute.xlu0 0
      %764 = vperm.xlu0 %763, %v706
      %v765 = vpop.permute.xlu0 %764
      %768 = vset.pattern.permute.xlu0 0
      %769 = vperm.xlu0 %768, %v707
      %v770 = vpop.permute.xlu0 %769
      %773 = vset.pattern.permute.xlu0 0
      %774 = vperm.xlu0 %773, %v708
      %v775 = vpop.permute.xlu0 %774
      %778 = vset.pattern.permute.xlu0 0
      %779 = vperm.xlu0 %778, %v709
      %v780 = vpop.permute.xlu0 %779
      %783 = vset.pattern.permute.xlu0 0
      %784 = vperm.xlu0 %783, %v710
      %v785 = vpop.permute.xlu0 %784
      %788 = vset.pattern.permute.xlu0 0
      %789 = vperm.xlu0 %788, %v711
      %v790 = vpop.permute.xlu0 %789
      %v792 = vmul.f32 %v657, %v715
      %v793 = vmul.f32 %v659, %v720
      %v794 = vmul.f32 %v662, %v725
      %v795 = vmul.f32 %v664, %v730
      %v796 = vmul.f32 %v667, %v735
      %v797 = vmul.f32 %v669, %v740
      %v798 = vmul.f32 %v672, %v745
      %v799 = vmul.f32 %v674, %v750
      %v800 = vmul.f32 %v677, %v755
      %v801 = vmul.f32 %v679, %v760
      %v802 = vmul.f32 %v682, %v765
      %v803 = vmul.f32 %v684, %v770
      %v804 = vmul.f32 %v687, %v775
      %v805 = vmul.f32 %v689, %v780
      %v806 = vmul.f32 %v692, %v785
      %v807 = vmul.f32 %v694, %v790
      %v808 = vld [vmem:[%s4] sm:$0x1]
      %v810 = vperm.slane %v808, 0
      %v812 = vadd.f32 %v792, %v810
      %v813 = vadd.f32 %v793, %v810
      %v814 = vadd.f32 %v794, %v810
      %v815 = vadd.f32 %v795, %v810
      %v816 = vadd.f32 %v796, %v810
      %v817 = vadd.f32 %v797, %v810
      %v818 = vadd.f32 %v798, %v810
      %v819 = vadd.f32 %v799, %v810
      %v820 = vadd.f32 %v800, %v810
      %v821 = vadd.f32 %v801, %v810
      %v822 = vadd.f32 %v802, %v810
      %v823 = vadd.f32 %v803, %v810
      %v824 = vadd.f32 %v804, %v810
      %v825 = vadd.f32 %v805, %v810
      %v826 = vadd.f32 %v806, %v810
      %v827 = vadd.f32 %v807, %v810
      %828 = vmax.xlane.f32.xlu0 %v812
      %v829 = vpop.xlane.xlu0 %828
      %830 = vmax.xlane.f32.xlu0 %v813
      %v831 = vpop.xlane.xlu0 %830
      %832 = vmax.xlane.f32.xlu0 %v814
      %v833 = vpop.xlane.xlu0 %832
      %834 = vmax.xlane.f32.xlu0 %v815
      %v835 = vpop.xlane.xlu0 %834
      %836 = vmax.xlane.f32.xlu0 %v816
      %v837 = vpop.xlane.xlu0 %836
      %838 = vmax.xlane.f32.xlu0 %v817
      %v839 = vpop.xlane.xlu0 %838
      %840 = vmax.xlane.f32.xlu0 %v818
      %v841 = vpop.xlane.xlu0 %840
      %842 = vmax.xlane.f32.xlu0 %v819
      %v843 = vpop.xlane.xlu0 %842
      %844 = vmax.xlane.f32.xlu0 %v820
      %v845 = vpop.xlane.xlu0 %844
      %846 = vmax.xlane.f32.xlu0 %v821
      %v847 = vpop.xlane.xlu0 %846
      %848 = vmax.xlane.f32.xlu0 %v822
      %v849 = vpop.xlane.xlu0 %848
      %850 = vmax.xlane.f32.xlu0 %v823
      %v851 = vpop.xlane.xlu0 %850
      %852 = vmax.xlane.f32.xlu0 %v824
      %v853 = vpop.xlane.xlu0 %852
      %854 = vmax.xlane.f32.xlu0 %v825
      %v855 = vpop.xlane.xlu0 %854
      %856 = vmax.xlane.f32.xlu0 %v826
      %v857 = vpop.xlane.xlu0 %856
      %858 = vmax.xlane.f32.xlu0 %v827
      %v859 = vpop.xlane.xlu0 %858
      %v860 = vsub.f32 %v812, %v829
      %v861 = vsub.f32 %v813, %v831
      %v862 = vsub.f32 %v814, %v833
      %v863 = vsub.f32 %v815, %v835
      %v864 = vsub.f32 %v816, %v837
      %v865 = vsub.f32 %v817, %v839
      %v866 = vsub.f32 %v818, %v841
      %v867 = vsub.f32 %v819, %v843
      %v868 = vsub.f32 %v820, %v845
      %v869 = vsub.f32 %v821, %v847
      %v870 = vsub.f32 %v822, %v849
      %v871 = vsub.f32 %v823, %v851
      %v872 = vsub.f32 %v824, %v853
      %v873 = vsub.f32 %v825, %v855
      %v874 = vsub.f32 %v826, %v857
      %v875 = vsub.f32 %v827, %v859
      %v876 = vmul.f32 %v860, 1.442695
      %v877 = vpow.pop %v876
      %v878 = vmul.f32 %v861, 1.442695
      %v879 = vpow.pop %v878
      %v880 = vmul.f32 %v862, 1.442695
      %v881 = vpow.pop %v880
      %v882 = vmul.f32 %v863, 1.442695
      %v883 = vpow.pop %v882
      %v884 = vmul.f32 %v864, 1.442695
      %v885 = vpow.pop %v884
      %v886 = vmul.f32 %v865, 1.442695
      %v887 = vpow.pop %v886
      %v888 = vmul.f32 %v866, 1.442695
      %v889 = vpow.pop %v888
      %v890 = vmul.f32 %v867, 1.442695
      %v891 = vpow.pop %v890
      %v892 = vmul.f32 %v868, 1.442695
      %v893 = vpow.pop %v892
      %v894 = vmul.f32 %v869, 1.442695
      %v895 = vpow.pop %v894
      %v896 = vmul.f32 %v870, 1.442695
      %v897 = vpow.pop %v896
      %v898 = vmul.f32 %v871, 1.442695
      %v899 = vpow.pop %v898
      %v900 = vmul.f32 %v872, 1.442695
      %v901 = vpow.pop %v900
      %v902 = vmul.f32 %v873, 1.442695
      %v903 = vpow.pop %v902
      %v904 = vmul.f32 %v874, 1.442695
      %v905 = vpow.pop %v904
      %v906 = vmul.f32 %v875, 1.442695
      %v907 = vpow.pop %v906
      %908 = vadd.xlane.f32.xlu0 %v877
      %v909 = vpop.xlane.xlu0 %908
      %910 = vadd.xlane.f32.xlu0 %v879
      %v911 = vpop.xlane.xlu0 %910
      %912 = vadd.xlane.f32.xlu0 %v881
      %v913 = vpop.xlane.xlu0 %912
      %914 = vadd.xlane.f32.xlu0 %v883
      %v915 = vpop.xlane.xlu0 %914
      %916 = vadd.xlane.f32.xlu0 %v885
      %v917 = vpop.xlane.xlu0 %916
      %918 = vadd.xlane.f32.xlu0 %v887
      %v919 = vpop.xlane.xlu0 %918
      %920 = vadd.xlane.f32.xlu0 %v889
      %v921 = vpop.xlane.xlu0 %920
      %922 = vadd.xlane.f32.xlu0 %v891
      %v923 = vpop.xlane.xlu0 %922
      %924 = vadd.xlane.f32.xlu0 %v893
      %v925 = vpop.xlane.xlu0 %924
      %926 = vadd.xlane.f32.xlu0 %v895
      %v927 = vpop.xlane.xlu0 %926
      %928 = vadd.xlane.f32.xlu0 %v897
      %v929 = vpop.xlane.xlu0 %928
      %930 = vadd.xlane.f32.xlu0 %v899
      %v931 = vpop.xlane.xlu0 %930
      %932 = vadd.xlane.f32.xlu0 %v901
      %v933 = vpop.xlane.xlu0 %932
      %934 = vadd.xlane.f32.xlu0 %v903
      %v935 = vpop.xlane.xlu0 %934
      %936 = vadd.xlane.f32.xlu0 %v905
      %v937 = vpop.xlane.xlu0 %936
      %938 = vadd.xlane.f32.xlu0 %v907
      %v939 = vpop.xlane.xlu0 %938
      %v940 = vlog2.pop %v909
      %v941 = vmul.f32 %v940, 0.6931472
      %v942 = vlog2.pop %v911
      %v943 = vmul.f32 %v942, 0.6931472
      %v944 = vlog2.pop %v913
      %v945 = vmul.f32 %v944, 0.6931472
      %v946 = vlog2.pop %v915
      %v947 = vmul.f32 %v946, 0.6931472
      %v948 = vlog2.pop %v917
      %v949 = vmul.f32 %v948, 0.6931472
      %v950 = vlog2.pop %v919
      %v951 = vmul.f32 %v950, 0.6931472
      %v952 = vlog2.pop %v921
      %v953 = vmul.f32 %v952, 0.6931472
      %v954 = vlog2.pop %v923
      %v955 = vmul.f32 %v954, 0.6931472
      %v956 = vlog2.pop %v925
      %v957 = vmul.f32 %v956, 0.6931472
      %v958 = vlog2.pop %v927
      %v959 = vmul.f32 %v958, 0.6931472
      %v960 = vlog2.pop %v929
      %v961 = vmul.f32 %v960, 0.6931472
      %v962 = vlog2.pop %v931
      %v963 = vmul.f32 %v962, 0.6931472
      %v964 = vlog2.pop %v933
      %v965 = vmul.f32 %v964, 0.6931472
      %v966 = vlog2.pop %v935
      %v967 = vmul.f32 %v966, 0.6931472
      %v968 = vlog2.pop %v937
      %v969 = vmul.f32 %v968, 0.6931472
      %v970 = vlog2.pop %v939
      %v971 = vmul.f32 %v970, 0.6931472
      %v972 = vsub.f32 %v860, %v941
      %v973 = vsub.f32 %v861, %v943
      %v974 = vsub.f32 %v862, %v945
      %v975 = vsub.f32 %v863, %v947
      %v976 = vsub.f32 %v864, %v949
      %v977 = vsub.f32 %v865, %v951
      %v978 = vsub.f32 %v866, %v953
      %v979 = vsub.f32 %v867, %v955
      %v980 = vsub.f32 %v868, %v957
      %v981 = vsub.f32 %v869, %v959
      %v982 = vsub.f32 %v870, %v961
      %v983 = vsub.f32 %v871, %v963
      %v984 = vsub.f32 %v872, %v965
      %v985 = vsub.f32 %v873, %v967
      %v986 = vsub.f32 %v874, %v969
      %v987 = vsub.f32 %v875, %v971
      %988 = vst [vmem:[%s251] sm:$0xff] %v972
      %989 = vst [vmem:[%s251 + $0x8] sm:$0xff] %v973
      %990 = vst [vmem:[%s251 + $0x10] sm:$0xff] %v974
      %991 = vst [vmem:[%s251 + $0x18] sm:$0xff] %v975
      %992 = vst [vmem:[%s251 + $0x20] sm:$0xff] %v976
      %993 = vst [vmem:[%s251 + $0x28] sm:$0xff] %v977
      %994 = vst [vmem:[%s251 + $0x30] sm:$0xff] %v978
      %995 = vst [vmem:[%s251 + $0x38] sm:$0xff] %v979
      %996 = vst [vmem:[%s251 + $0x40] sm:$0xff] %v980
      %997 = vst [vmem:[%s251 + $0x48] sm:$0xff] %v981
      %998 = vst [vmem:[%s251 + $0x50] sm:$0xff] %v982
      %999 = vst [vmem:[%s251 + $0x58] sm:$0xff] %v983
      %1000 = vst [vmem:[%s251 + $0x60] sm:$0xff] %v984
      %1001 = vst [vmem:[%s251 + $0x68] sm:$0xff] %v985
      %1002 = vst [vmem:[%s251 + $0x70] sm:$0xff] %v986
      %1003 = vst [vmem:[%s251 + $0x78] sm:$0xff] %v987
      %s1004 = smul.u32 16, %s16
      %p1005 = scmp.lt.s32.totalorder %s1004, 31
      %s1006 = scalar_select %p1005, %s1004, 31
      %s1007 = smul.addr %s1006, 8
      %s1008 = scalar_lea.vmem %s5, %s1007
      // Predicated region
      $region41: #{gnn_forward.3} parent=39 // pred_check
        %p1009 = pneg %p149
      $region42: #{gnn_forward.3} parent=39 // pred_check_branch
        %1011 = sbr.rel (%p1009) target = $region44
      $region43: #{gnn_forward.3} parent=39 // pred_region
        %s1012 = smul.u32 16, %s16
      $region44: #{gnn_forward.3} parent=39 // pred_fallthru
        _
    $region40: #{gnn_forward.3} parent=5 // pred_fallthru
      _
    %p1013 = scmp.le.s32.totalorder 2, %s11
    // Predicated region
    $region45: #{gnn_forward.3} parent=5 // pred_check
      %p1014 = pneg %p1013
    $region46: #{gnn_forward.3} parent=5 // pred_check_branch
      %1016 = sbr.rel (%p1014) target = $region48
    $region47: #{gnn_forward.3} parent=5 // pred_region
      %s1017 = ssub.s32 %s11, 2
      // Predicated region
      $region49: #{gnn_forward.3} parent=47 // pred_check
        %p1018 = pneg %p155
      $region50: #{gnn_forward.3} parent=47 // pred_check_branch
        %1020 = sbr.rel (%p1018) target = $region52
      $region51: #{gnn_forward.3} parent=47 // pred_region
        %s1021 = smul.u32 16, %s17
        %p1022 = scmp.lt.s32.totalorder %s1021, 31
        %s1023 = scalar_select %p1022, %s1021, 31
        %s1024 = smul.addr %s1023, 8
        %s1025 = scalar_lea.vmem %s5, %s1024
      $region52: #{gnn_forward.3} parent=47 // pred_fallthru
        _
    $region48: #{gnn_forward.3} parent=5 // pred_fallthru
      _
  $region6: #{gnn_forward.3} parent=0 // loop_footer
    %s15 = sadd.s32 1, %s11
  $region7: #{gnn_forward.3} parent=0 // loop_footer_branch
    %10 = sbr.rel target = $region3
  $region8: #{gnn_forward.3} parent=0 // loop_exit
    _

</llo_original>
